<compile_context>
chip_gen: v7x
topology: tpu7x:2x2x1
jax: 0.10.0
libtpu: 0.0.40
codegen_flags: <defaults>
</compile_context>

<pallas_src>
import functools

import jax
import jax.numpy as jnp
from jax import lax
from jax.experimental import pallas as pl
from jax.experimental.pallas import tpu as pltpu


def head_kernel(x_ref, wqkv_ref, o_ref):
    """One grid step = Bblk batch rows; whole (Bblk, T, C) tile lives in VMEM."""
    Bblk, T, C = x_ref.shape
    H3 = wqkv_ref.shape[1]
    H = H3 // 3
    scale = 1.0 / (H ** 0.5)          # static (k.shape[-1] ** -0.5)

    # Fused QKV projection: single lane-dense (C, 3H) matmul on the MXU.
    x = x_ref[...].reshape(Bblk * T, C)                           # bf16 (Bblk*T, C)
    qkv = jnp.dot(x, wqkv_ref[...],
                  preferred_element_type=jnp.float32)             # f32 (Bblk*T, 3H)

    # Slice q/k/v; scale q (the small T x H tile) instead of the T x T scores.
    q = (qkv[:, 0 * H:1 * H] * scale).reshape(Bblk, T, H)
    k = qkv[:, 1 * H:2 * H].reshape(Bblk, T, H)
    v = qkv[:, 2 * H:3 * H].reshape(Bblk, T, H)

    # Scores: contract over H directly (no explicit k.T), bf16 operands, f32 acc.
    wei = jnp.einsum("bqh,bkh->bqk",
                     q.astype(jnp.bfloat16), k.astype(jnp.bfloat16),
                     preferred_element_type=jnp.float32)          # (Bblk, T, T)

    # Causal (tril) mask built once in 2-D and broadcast over the batch rows.
    row = lax.broadcasted_iota(jnp.int32, (T, T), 0)
    col = lax.broadcasted_iota(jnp.int32, (T, T), 1)
    causal = (col <= row)[None, :, :]                             # (1, T, T) bool
    wei = jnp.where(causal, wei, -jnp.inf)

    # Numerically stable softmax in f32; normalization deferred past the PV matmul.
    wei = wei - jnp.max(wei, axis=-1, keepdims=True)              # row max finite (diag)
    p = jnp.exp(wei)                                              # unnormalized probs
    l = jnp.sum(p, axis=-1, keepdims=True)                        # (Bblk, T, 1)

    # (dropout = identity in eval mode)

    out = jnp.einsum("bqk,bkh->bqh",
                     p.astype(jnp.bfloat16), v.astype(jnp.bfloat16),
                     preferred_element_type=jnp.float32)          # (Bblk, T, H)
    # Apply 1/l on the small (T, H) output tile (EUP reciprocal, VALU mul).
    out = out * pl.reciprocal(l, approx=True)

    # TODO(synk): fuse >=2 heads so the output lane dim reaches 128 (lane-dense vst).
    o_ref[...] = out.astype(o_ref.dtype)


@functools.partial(jax.jit, static_argnames=("block_b",))
def head_forward(x, wq, wk, wv, *, block_b=1):
    """x: (B, T, C) f32; wq/wk/wv: (C, H) f32  ->  (B, T, H) f32."""
    B, T, C = x.shape
    H = wq.shape[1]
    assert B % block_b == 0, (B, block_b)

    # bf16 inputs: halves HBM->VMEM bytes and hits the bf16 MXU datapath.
    x_b = x.astype(jnp.bfloat16)
    wqkv = jnp.concatenate([wq, wk, wv], axis=1).astype(jnp.bfloat16)   # (C, 3H)

    return pl.pallas_call(
        head_kernel,
        out_shape=jax.ShapeDtypeStruct((B, T, H), x.dtype),
        grid_spec=pltpu.PrefetchScalarGridSpec(
            num_scalar_prefetch=0,
            grid=(B // block_b,),
            in_specs=[
                pl.BlockSpec((block_b, T, C), lambda b: (b, 0, 0)),   # x rows
                pl.BlockSpec((C, 3 * H), lambda b: (0, 0)),           # fused Wqkv
            ],
            out_specs=pl.BlockSpec((block_b, T, H), lambda b: (b, 0, 0)),
        ),
        compiler_params=pltpu.CompilerParams(
            dimension_semantics=("parallel",),
            vmem_limit_bytes=32 * 1024 * 1024,   # explicit budget (v7x-safe)
        ),
    )(x_b, wqkv)


def reference_head(x, wq, wk, wv):
    """Pure-JAX f32 reference mirroring the PyTorch forward (eval mode)."""
    B, T, C = x.shape
    H = wq.shape[1]
    q = x @ wq
    k = x @ wk
    v = x @ wv
    wei = (q @ jnp.swapaxes(k, -2, -1)) * (H ** -0.5)
    mask = jnp.tril(jnp.ones((T, T), dtype=bool))
    wei = jnp.where(mask[None, :, :], wei, -jnp.inf)
    wei = jax.nn.softmax(wei, axis=-1)
    return wei @ v


if __name__ == "__main__":
    # Small-but-representative shapes: T=128 (<= block_size=256),
    # C=n_embd=256 (fixed by the module), head_size=64.
    B, T, C, H = 4, 128, 256, 64
    block_b = 2   # grid = (2,): amortizes per-step overhead, keeps 2 steps for v7x

    key = jax.random.PRNGKey(0)
    kx, kq, kk, kv = jax.random.split(key, 4)

    x = jax.random.normal(kx, (B, T, C), dtype=jnp.float32)
    # nn.Linear default init: U(-1/sqrt(fan_in), 1/sqrt(fan_in)), fan_in = C.
    bound = 1.0 / (C ** 0.5)
    wq = jax.random.uniform(kq, (C, H), jnp.float32, -bound, bound)
    wk = jax.random.uniform(kk, (C, H), jnp.float32, -bound, bound)
    wv = jax.random.uniform(kv, (C, H), jnp.float32, -bound, bound)

    out = head_forward(x, wq, wk, wv, block_b=block_b)
    out = jax.block_until_ready(out)

    ref = reference_head(x, wq, wk, wv)
    assert out.shape == (B, T, H), out.shape
    # bf16 matmul operands + approx reciprocal -> looser tolerance vs f32 reference.
    max_err = float(jnp.max(jnp.abs(out - ref)))
    assert jnp.allclose(out, ref, atol=5e-2, rtol=5e-2), max_err

    print("KERNEL_OK")
</pallas_src>

<mosaic_0001>
module attributes {stable_mosaic.version = 11 : i64} {
  func.func @head_kernel(%arg0: i32, %arg1: memref<2x128x256xbf16, #tpu.memory_space<vmem>>, %arg2: memref<256x192xbf16, #tpu.memory_space<vmem>>, %arg3: memref<2x128x64xf32, #tpu.memory_space<vmem>>) attributes {dimension_semantics = [#tpu.dimension_semantics<parallel>], iteration_bounds = array<i64: 2>, scalar_prefetch = 0 : i64, scratch_operands = 0 : i64, tpu.core_type = #tpu.core_type<tc>, window_params = [{transform_indices = @transform_0, window_bounds = array<i64: 2, 128, 256>}, {pipeline_mode = #tpu.pipeline_mode<synchronous>, transform_indices = @transform_1, window_bounds = array<i64: 256, 192>}, {transform_indices = @transform_2, window_bounds = array<i64: 2, 128, 64>}]} {
    %c0 = arith.constant 0 : index
    %c0_0 = arith.constant 0 : index
    %c0_1 = arith.constant 0 : index
    %0 = vector.load %arg1[%c0, %c0_0, %c0_1] : memref<2x128x256xbf16, #tpu.memory_space<vmem>>, vector<2x128x256xbf16>
    %1 = vector.shape_cast %0 : vector<2x128x256xbf16> to vector<256x256xbf16>
    %c0_2 = arith.constant 0 : index
    %c0_3 = arith.constant 0 : index
    %2 = vector.load %arg2[%c0_2, %c0_3] : memref<256x192xbf16, #tpu.memory_space<vmem>>, vector<256x192xbf16>
    %cst = arith.constant dense<0.000000e+00> : vector<256x192xf32>
    %3 = tpu.matmul %1, %2, %cst {dimension_numbers = #tpu.dot_dimension_numbers<[1], [0], [0], [1], [0, 0, 1, 1], [], []>} : vector<256x256xbf16>, vector<256x192xbf16>, vector<256x192xf32> -> vector<256x192xf32>
    %4 = vector.extract_strided_slice %3 {offsets = [0, 0], sizes = [256, 64], strides = [1, 1]} : vector<256x192xf32> to vector<256x64xf32>
    %cst_4 = arith.constant 1.250000e-01 : f32
    %5 = vector.broadcast %cst_4 : f32 to vector<256x64xf32>
    %6 = arith.mulf %4, %5 : vector<256x64xf32>
    %7 = vector.shape_cast %6 : vector<256x64xf32> to vector<2x128x64xf32>
    %8 = vector.extract_strided_slice %3 {offsets = [0, 64], sizes = [256, 64], strides = [1, 1]} : vector<256x192xf32> to vector<256x64xf32>
    %9 = vector.shape_cast %8 : vector<256x64xf32> to vector<2x128x64xf32>
    %10 = vector.extract_strided_slice %3 {offsets = [0, 128], sizes = [256, 64], strides = [1, 1]} : vector<256x192xf32> to vector<256x64xf32>
    %11 = vector.shape_cast %10 : vector<256x64xf32> to vector<2x128x64xf32>
    %12 = arith.truncf %7 : vector<2x128x64xf32> to vector<2x128x64xbf16>
    %13 = arith.truncf %9 : vector<2x128x64xf32> to vector<2x128x64xbf16>
    "tpu.trace_start"() <{level = 10 : i32, message = "bqh,bkh->bqk"}> : () -> ()
    %cst_5 = arith.constant dense<0.000000e+00> : vector<2x128x128xf32>
    %14 = tpu.matmul %12, %13, %cst_5 {dimension_numbers = #tpu.dot_dimension_numbers<[2], [2], [1], [1], [0, 0, 0, 1, 1, 1], [0], [0]>} : vector<2x128x64xbf16>, vector<2x128x64xbf16>, vector<2x128x128xf32> -> vector<2x128x128xf32>
    "tpu.trace_stop"() : () -> ()
    %15 = tpu.iota {dimensions = array<i32: 0>} : vector<128x128xi32>
    %16 = tpu.iota {dimensions = array<i32: 1>} : vector<128x128xi32>
    %17 = arith.cmpi sle, %16, %15 : vector<128x128xi32>
    %18 = vector.shape_cast %17 : vector<128x128xi1> to vector<1x128x128xi1>
    %cst_6 = arith.constant 0xFF800000 : f32
    %19 = vector.shape_cast %18 : vector<1x128x128xi1> to vector<1x128x128xi1>
    %20 = vector.broadcast %19 : vector<1x128x128xi1> to vector<2x128x128xi1>
    %21 = vector.broadcast %cst_6 : f32 to vector<2x128x128xf32>
    %22 = arith.select %20, %14, %21 : vector<2x128x128xi1>, vector<2x128x128xf32>
    %cst_7 = arith.constant dense<0xFF800000> : vector<2x128xf32>
    %23 = vector.multi_reduction <maximumf>, %22, %cst_7 [2] : vector<2x128x128xf32> to vector<2x128xf32>
    %24 = vector.shape_cast %23 : vector<2x128xf32> to vector<2x128x1xf32>
    %25 = vector.broadcast %24 : vector<2x128x1xf32> to vector<2x128x128xf32>
    %26 = arith.subf %22, %25 : vector<2x128x128xf32>
    %27 = math.exp %26 : vector<2x128x128xf32>
    %cst_8 = arith.constant dense<0.000000e+00> : vector<2x128xf32>
    %28 = vector.multi_reduction <add>, %27, %cst_8 [2] : vector<2x128x128xf32> to vector<2x128xf32>
    %29 = vector.shape_cast %28 : vector<2x128xf32> to vector<2x128x1xf32>
    %30 = arith.truncf %27 : vector<2x128x128xf32> to vector<2x128x128xbf16>
    %31 = arith.truncf %11 : vector<2x128x64xf32> to vector<2x128x64xbf16>
    "tpu.trace_start"() <{level = 10 : i32, message = "bqk,bkh->bqh"}> : () -> ()
    %cst_9 = arith.constant dense<0.000000e+00> : vector<2x128x64xf32>
    %32 = tpu.matmul %30, %31, %cst_9 {dimension_numbers = #tpu.dot_dimension_numbers<[2], [1], [1], [2], [0, 0, 0, 1, 1, 2], [0], [0]>} : vector<2x128x128xbf16>, vector<2x128x64xbf16>, vector<2x128x64xf32> -> vector<2x128x64xf32>
    "tpu.trace_stop"() : () -> ()
    %33 = tpu.reciprocal %29 {approx = true} : vector<2x128x1xf32> -> vector<2x128x1xf32>
    %34 = vector.broadcast %33 : vector<2x128x1xf32> to vector<2x128x64xf32>
    %35 = arith.mulf %32, %34 : vector<2x128x64xf32>
    %c0_10 = arith.constant 0 : index
    %c0_11 = arith.constant 0 : index
    %c0_12 = arith.constant 0 : index
    %36 = vector.load %arg3[%c0_10, %c0_11, %c0_12] : memref<2x128x64xf32, #tpu.memory_space<vmem>>, vector<2x128x64xf32>
    tpu.vector_store %arg3[%c0_10, %c0_11, %c0_12], %35 {strides = array<i32>} : memref<2x128x64xf32, #tpu.memory_space<vmem>>, vector<2x128x64xf32>,
    return
  }
  func.func @transform_0(%arg0: i32) -> (i32, i32, i32) {
    %c0_i32 = arith.constant 0 : i32
    %c0_i32_0 = arith.constant 0 : i32
    %c0_i32_1 = arith.constant 0 : i32
    return %arg0, %c0_i32, %c0_i32_0 : i32, i32, i32
  }
  func.func @transform_1(%arg0: i32) -> (i32, i32) {
    %c0_i32 = arith.constant 0 : i32
    %c0_i32_0 = arith.constant 0 : i32
    %c0_i32_1 = arith.constant 0 : i32
    return %c0_i32, %c0_i32_0 : i32, i32
  }
  func.func @transform_2(%arg0: i32) -> (i32, i32, i32) {
    %c0_i32 = arith.constant 0 : i32
    %c0_i32_0 = arith.constant 0 : i32
    %c0_i32_1 = arith.constant 0 : i32
    return %arg0, %c0_i32, %c0_i32_0 : i32, i32, i32
  }
}

</mosaic_0001>

<llo_original>
// kernel: head_forward.1
$region0: #{head_forward.1}
  #allocation0 [shape = 'u32[]', space=smem, size = 0x4, offset = 0x4, fixed_abs, tag = 'smem constant byte address 0x4 - core index']
  #allocation1 [shape = 'u32[144,128]{1,0:T(1,128)}', space=vmem, size = 0x12000, scoped, tag = 'internal scratch']
  %s0 = inlined_call_operand.vmem [shape: bf16[4,128,256], index: 0, kind: input, shape index: {}]
  %s1 = inlined_call_operand.vmem [shape: bf16[256,192], index: 1, kind: input, shape index: {}]
  %s2 = inlined_call_operand.vmem [shape: f32[4,128,64], index: 2, kind: output, shape index: {}]
  %s3 = sld [smem:[#allocation0]]
  $region41: #{head_forward.1} parent=0
    _
  %s5 = ssub.s32 1, %s3
  %s6 = scalar_select 0, %s5, %s3
  loop: start=0, step=1, limit=4
  $region2: #{head_forward.1} parent=0 // loop_pre_header
    _
  $region3: #{head_forward.1} parent=0 // loop_header
    %s8 = sphi 0, %s12
    %p9 = scmp.ge.s32.totalorder %s8, 4
    %s18 = sphi 0, %s20
    %s21 = sphi 0, %s18
    %s22 = sphi 0, %s21
    %s38 = sphi 0, %s22
    %s42 = sphi 0, %s42
    %s44 = sphi 0, %s42
    %s45 = sphi 0, %s44
    %s59 = sphi 0, %s45
    %s65 = sphi 0, %s67
    %s68 = sphi 0, %s65
    %s69 = sphi 0, %s68
    %s85 = sphi 0, %s69
  $region4: #{head_forward.1} parent=0 // loop_header_branch
    %11 = sbr.rel (%p9) target = $region8
  $region5: #{head_forward.1} parent=0 // loop_body
    %s13 = ssub.s32 %s8, 1
    %s14 = ssub.s32 %s8, 2
    %s15 = sadd.s32 %s8, 1
    %s16 = ssub.s32 %s8, %s15
    %p17 = scmp.eq.s32.totalorder %s16, 0
    %s19 = sadd.s32 %s18, 1
    %s20 = scalar_select %p17, %s18, %s19
    %p23 = pneg %p17
    %p24 = scmp.eq.s32.totalorder %s8, 1
    %p25 = por %p23, %p24
    %p26 = scmp.ne.s32.totalorder %s18, %s21
    %p27 = scmp.eq.s32.totalorder %s8, 0
    %p28 = por %p26, %p27
    %p29 = scmp.ne.s32.totalorder %s18, %s21
    %p30 = scmp.eq.s32.totalorder %s13, 1
    %p31 = por %p29, %p30
    %p32 = scmp.ne.s32.totalorder %s21, %s22
    %p33 = scmp.eq.s32.totalorder %s13, 0
    %p34 = por %p32, %p33
    %p35 = scmp.ne.s32.totalorder %s21, %s22
    %p36 = scmp.eq.s32.totalorder %s14, 1
    %p37 = por %p35, %p36
    %p39 = scmp.ne.s32.totalorder %s22, %s38
    %p40 = scmp.eq.s32.totalorder %s14, 0
    %p41 = por %p39, %p40
    %s43 = sadd.s32 %s42, 1
    %p46 = scmp.eq.s32.totalorder %s8, 1
    %p47 = scmp.ne.s32.totalorder %s42, %s44
    %p48 = scmp.eq.s32.totalorder %s8, 0
    %p49 = por %p47, %p48
    %p50 = scmp.ne.s32.totalorder %s42, %s44
    %p51 = scmp.eq.s32.totalorder %s13, 1
    %p52 = por %p50, %p51
    %p53 = scmp.ne.s32.totalorder %s44, %s45
    %p54 = scmp.eq.s32.totalorder %s13, 0
    %p55 = por %p53, %p54
    %p56 = scmp.ne.s32.totalorder %s44, %s45
    %p57 = scmp.eq.s32.totalorder %s14, 1
    %p58 = por %p56, %p57
    %p60 = scmp.ne.s32.totalorder %s45, %s59
    %p61 = scmp.eq.s32.totalorder %s14, 0
    %p62 = por %p60, %p61
    %s63 = ssub.s32 %s8, %s15
    %p64 = scmp.eq.s32.totalorder %s63, 0
    %s66 = sadd.s32 %s65, 1
    %s67 = scalar_select %p64, %s65, %s66
    %p70 = pneg %p64
    %p71 = scmp.eq.s32.totalorder %s8, 1
    %p72 = por %p70, %p71
    %p73 = scmp.ne.s32.totalorder %s65, %s68
    %p74 = scmp.eq.s32.totalorder %s8, 0
    %p75 = por %p73, %p74
    %p76 = scmp.ne.s32.totalorder %s65, %s68
    %p77 = scmp.eq.s32.totalorder %s13, 1
    %p78 = por %p76, %p77
    %p79 = scmp.ne.s32.totalorder %s68, %s69
    %p80 = scmp.eq.s32.totalorder %s13, 0
    %p81 = por %p79, %p80
    %p82 = scmp.ne.s32.totalorder %s68, %s69
    %p83 = scmp.eq.s32.totalorder %s14, 1
    %p84 = por %p82, %p83
    %p86 = scmp.ne.s32.totalorder %s69, %s85
    %p87 = scmp.eq.s32.totalorder %s14, 0
    %p88 = por %p86, %p87
    %p89 = scmp.le.s32.totalorder 1, %s8
    %p90 = scmp.lt.s32.totalorder %s8, 3
    %p91 = pnand %p89, %p90
    %p92 = pneg %p91
    // Predicated region
    $region9: #{head_forward.1} parent=5 // pred_check
      _
    $region10: #{head_forward.1} parent=5 // pred_check_branch
      %94 = sbr.rel (%p91) target = $region12
    $region11: #{head_forward.1} parent=5 // pred_region
      %s95 = ssub.s32 %s8, 1
      // Predicated region
      $region13: #{head_forward.1} parent=11 // pred_check
        %p96 = pneg %p55
      $region14: #{head_forward.1} parent=11 // pred_check_branch
        %98 = sbr.rel (%p96) target = $region16
      $region15: #{head_forward.1} parent=11 // pred_region
        _
      $region16: #{head_forward.1} parent=11 // pred_fallthru
        _
    $region12: #{head_forward.1} parent=5 // pred_fallthru
      _
    %p99 = scmp.lt.s32.totalorder %s8, 2
    // Predicated region
    $region17: #{head_forward.1} parent=5 // pred_check
      %p100 = pneg %p99
    $region18: #{head_forward.1} parent=5 // pred_check_branch
      %102 = sbr.rel (%p100) target = $region20
    $region19: #{head_forward.1} parent=5 // pred_region
      // Predicated region
      $region21: #{head_forward.1} parent=19 // pred_check
        %p103 = pneg %p28
      $region22: #{head_forward.1} parent=19 // pred_check_branch
        %105 = sbr.rel (%p103) target = $region24
      $region23: #{head_forward.1} parent=19 // pred_region
        %s106 = smul.u32 2, %s8
        %p107 = scmp.lt.s32.totalorder %s106, 3
        %s108 = scalar_select %p107, %s106, 3
        %s109 = smul.addr %s108, 32
        %s110 = smul.addr %s109, 4
        %s111 = scalar_lea.vmem %s0, %s110
        %s112 = smul.u32 2, %s8
      $region24: #{head_forward.1} parent=19 // pred_fallthru
        _
    $region20: #{head_forward.1} parent=5 // pred_fallthru
      _
    %p113 = scmp.le.s32.totalorder 1, %s8
    %p114 = scmp.lt.s32.totalorder %s8, 3
    %p115 = pnand %p113, %p114
    %p116 = pneg %p115
    // Predicated region
    $region25: #{head_forward.1} parent=5 // pred_check
      _
    $region26: #{head_forward.1} parent=5 // pred_check_branch
      %118 = sbr.rel (%p115) target = $region28
    $region27: #{head_forward.1} parent=5 // pred_region
      %s119 = ssub.s32 %s8, 1
      %s120 = smul.u32 2, %s13
      %p121 = scmp.lt.s32.totalorder %s120, 3
      %s122 = scalar_select %p121, %s120, 3
      %s123 = smul.addr %s122, 32
      %s124 = smul.addr %s123, 4
      %s125 = scalar_lea.vmem %s0, %s124
      %p126 = pneg %p34
      %p127 = pneg %p31
      %p128 = pneg %p55
      %p129 = pneg %p52
      %p130 = pneg %p81
      %p131 = pneg %p78
      %s132 = smul.u32 2, %s13
      %p133 = scmp.lt.s32.totalorder %s132, 3
      %s134 = scalar_select %p133, %s132, 3
      %s135 = smul.addr %s134, 16
      %s136 = smul.addr %s135, 8
      %s137 = scalar_lea.vmem %s2, %s136
      %s138 = smul.u32 2, %s13
      %p139 = scmp.lt.s32.totalorder %s138, 3
      %s140 = scalar_select %p139, %s138, 3
      %s141 = smul.addr %s140, 32
      %s142 = smul.addr %s141, 4
      %s143 = scalar_lea.vmem %s0, %s142
      %s144 = smul.u32 2, %s13
      %s145 = smul.u32 2, %s13
      %p146 = scmp.lt.s32.totalorder %s145, 3
      %s147 = scalar_select %p146, %s145, 3
      %s148 = smul.addr %s147, 16
      %s149 = smul.addr %s148, 8
      %s150 = scalar_lea.vmem %s2, %s149
      %s151 = smul.u32 2, %s13
      %v153 = vld [vmem:[%s143] sm:$0xff]
      %v154 = vld [vmem:[%s143 + $0x8] sm:$0xff]
      %v155 = vld [vmem:[%s143 + $0x10] sm:$0xff]
      %v156 = vld [vmem:[%s143 + $0x18] sm:$0xff]
      %v157 = vld [vmem:[%s143 + $0x20] sm:$0xff]
      %v158 = vld [vmem:[%s143 + $0x28] sm:$0xff]
      %v159 = vld [vmem:[%s143 + $0x30] sm:$0xff]
      %v160 = vld [vmem:[%s143 + $0x38] sm:$0xff]
      %v161 = vld [vmem:[%s143 + $0x40] sm:$0xff]
      %v162 = vld [vmem:[%s143 + $0x48] sm:$0xff]
      %v163 = vld [vmem:[%s143 + $0x50] sm:$0xff]
      %v164 = vld [vmem:[%s143 + $0x58] sm:$0xff]
      %v165 = vld [vmem:[%s143 + $0x60] sm:$0xff]
      %v166 = vld [vmem:[%s143 + $0x68] sm:$0xff]
      %v167 = vld [vmem:[%s143 + $0x70] sm:$0xff]
      %v168 = vld [vmem:[%s143 + $0x78] sm:$0xff]
      %v169 = vld [vmem:[%s143 + $0x80] sm:$0xff]
      %v170 = vld [vmem:[%s143 + $0x88] sm:$0xff]
      %v171 = vld [vmem:[%s143 + $0x90] sm:$0xff]
      %v172 = vld [vmem:[%s143 + $0x98] sm:$0xff]
      %v173 = vld [vmem:[%s143 + $0xa0] sm:$0xff]
      %v174 = vld [vmem:[%s143 + $0xa8] sm:$0xff]
      %v175 = vld [vmem:[%s143 + $0xb0] sm:$0xff]
      %v176 = vld [vmem:[%s143 + $0xb8] sm:$0xff]
      %v177 = vld [vmem:[%s143 + $0xc0] sm:$0xff]
      %v178 = vld [vmem:[%s143 + $0xc8] sm:$0xff]
      %v179 = vld [vmem:[%s143 + $0xd0] sm:$0xff]
      %v180 = vld [vmem:[%s143 + $0xd8] sm:$0xff]
      %v181 = vld [vmem:[%s143 + $0xe0] sm:$0xff]
      %v182 = vld [vmem:[%s143 + $0xe8] sm:$0xff]
      %v183 = vld [vmem:[%s143 + $0xf0] sm:$0xff]
      %v184 = vld [vmem:[%s143 + $0xf8] sm:$0xff]
      %v185 = vld [vmem:[%s1] sm:$0xff]
      %v186 = vld [vmem:[%s1 + $0x8] sm:$0xff]
      %v187 = vld [vmem:[%s1 + $0x10] sm:$0xff]
      %v188 = vld [vmem:[%s1 + $0x18] sm:$0xff]
      %v189 = vld [vmem:[%s1 + $0x20] sm:$0xff]
      %v190 = vld [vmem:[%s1 + $0x28] sm:$0xff]
      %v191 = vld [vmem:[%s1 + $0x30] sm:$0xff]
      %v192 = vld [vmem:[%s1 + $0x38] sm:$0xff]
      %v193 = vld [vmem:[%s1 + $0x40] sm:$0xff]
      %v194 = vld [vmem:[%s1 + $0x48] sm:$0xff]
      %v195 = vld [vmem:[%s1 + $0x50] sm:$0xff]
      %v196 = vld [vmem:[%s1 + $0x58] sm:$0xff]
      %v197 = vld [vmem:[%s1 + $0x60] sm:$0xff]
      %v198 = vld [vmem:[%s1 + $0x68] sm:$0xff]
      %v199 = vld [vmem:[%s1 + $0x70] sm:$0xff]
      %v200 = vld [vmem:[%s1 + $0x78] sm:$0xff]
      %v201 = vld [vmem:[%s1 + $0x80] sm:$0xff]
      %v202 = vld [vmem:[%s1 + $0x88] sm:$0xff]
      %v203 = vld [vmem:[%s1 + $0x90] sm:$0xff]
      %v204 = vld [vmem:[%s1 + $0x98] sm:$0xff]
      %v205 = vld [vmem:[%s1 + $0xa0] sm:$0xff]
      %v206 = vld [vmem:[%s1 + $0xa8] sm:$0xff]
      %v207 = vld [vmem:[%s1 + $0xb0] sm:$0xff]
      %v208 = vld [vmem:[%s1 + $0xb8] sm:$0xff]
      %v209 = vld [vmem:[%s1 + $0xc0] sm:$0xff]
      %v210 = vld [vmem:[%s1 + $0xc8] sm:$0xff]
      %v211 = vld [vmem:[%s1 + $0xd0] sm:$0xff]
      %v212 = vld [vmem:[%s1 + $0xd8] sm:$0xff]
      %v213 = vld [vmem:[%s1 + $0xe0] sm:$0xff]
      %v214 = vld [vmem:[%s1 + $0xe8] sm:$0xff]
      %v215 = vld [vmem:[%s1 + $0xf0] sm:$0xff]
      %v216 = vld [vmem:[%s1 + $0xf8] sm:$0xff]
      %v249 = vunpack.c.l.b16 %v153
      %v250 = vunpack.c.h.b16 %v153
      %v251 = vunpack.c.l.b16 %v154
      %v252 = vunpack.c.h.b16 %v154
      %v253 = vunpack.c.l.b16 %v155
      %v254 = vunpack.c.h.b16 %v155
      %v255 = vunpack.c.l.b16 %v156
      %v256 = vunpack.c.h.b16 %v156
      %v257 = vunpack.c.l.b16 %v157
      %v258 = vunpack.c.h.b16 %v157
      %v259 = vunpack.c.l.b16 %v158
      %v260 = vunpack.c.h.b16 %v158
      %v261 = vunpack.c.l.b16 %v159
      %v262 = vunpack.c.h.b16 %v159
      %v263 = vunpack.c.l.b16 %v160
      %v264 = vunpack.c.h.b16 %v160
      %v265 = vunpack.c.l.b16 %v161
      %v266 = vunpack.c.h.b16 %v161
      %v267 = vunpack.c.l.b16 %v162
      %v268 = vunpack.c.h.b16 %v162
      %v269 = vunpack.c.l.b16 %v163
      %v270 = vunpack.c.h.b16 %v163
      %v271 = vunpack.c.l.b16 %v164
      %v272 = vunpack.c.h.b16 %v164
      %v273 = vunpack.c.l.b16 %v165
      %v274 = vunpack.c.h.b16 %v165
      %v275 = vunpack.c.l.b16 %v166
      %v276 = vunpack.c.h.b16 %v166
      %v277 = vunpack.c.l.b16 %v167
      %v278 = vunpack.c.h.b16 %v167
      %v279 = vunpack.c.l.b16 %v168
      %v280 = vunpack.c.h.b16 %v168
      %v281 = vunpack.c.l.b16 %v169
      %v282 = vunpack.c.h.b16 %v169
      %v283 = vunpack.c.l.b16 %v170
      %v284 = vunpack.c.h.b16 %v170
      %v285 = vunpack.c.l.b16 %v171
      %v286 = vunpack.c.h.b16 %v171
      %v287 = vunpack.c.l.b16 %v172
      %v288 = vunpack.c.h.b16 %v172
      %v289 = vunpack.c.l.b16 %v173
      %v290 = vunpack.c.h.b16 %v173
      %v291 = vunpack.c.l.b16 %v174
      %v292 = vunpack.c.h.b16 %v174
      %v293 = vunpack.c.l.b16 %v175
      %v294 = vunpack.c.h.b16 %v175
      %v295 = vunpack.c.l.b16 %v176
      %v296 = vunpack.c.h.b16 %v176
      %v297 = vunpack.c.l.b16 %v177
      %v298 = vunpack.c.h.b16 %v177
      %v299 = vunpack.c.l.b16 %v178
      %v300 = vunpack.c.h.b16 %v178
      %v301 = vunpack.c.l.b16 %v179
      %v302 = vunpack.c.h.b16 %v179
      %v303 = vunpack.c.l.b16 %v180
      %v304 = vunpack.c.h.b16 %v180
      %v305 = vunpack.c.l.b16 %v181
      %v306 = vunpack.c.h.b16 %v181
      %v307 = vunpack.c.l.b16 %v182
      %v308 = vunpack.c.h.b16 %v182
      %v309 = vunpack.c.l.b16 %v183
      %v310 = vunpack.c.h.b16 %v183
      %v311 = vunpack.c.l.b16 %v184
      %v312 = vunpack.c.h.b16 %v184
      %v313 = vpack.c.b16 %v251, %v249
      %v314 = vpack.c.b16 %v252, %v250
      %v315 = vpack.c.b16 %v255, %v253
      %v316 = vpack.c.b16 %v256, %v254
      %v317 = vpack.c.b16 %v259, %v257
      %v318 = vpack.c.b16 %v260, %v258
      %v319 = vpack.c.b16 %v263, %v261
      %v320 = vpack.c.b16 %v264, %v262
      %v321 = vpack.c.b16 %v267, %v265
      %v322 = vpack.c.b16 %v268, %v266
      %v323 = vpack.c.b16 %v271, %v269
      %v324 = vpack.c.b16 %v272, %v270
      %v325 = vpack.c.b16 %v275, %v273
      %v326 = vpack.c.b16 %v276, %v274
      %v327 = vpack.c.b16 %v279, %v277
      %v328 = vpack.c.b16 %v280, %v278
      %v329 = vpack.c.b16 %v283, %v281
      %v330 = vpack.c.b16 %v284, %v282
      %v331 = vpack.c.b16 %v287, %v285
      %v332 = vpack.c.b16 %v288, %v286
      %v333 = vpack.c.b16 %v291, %v289
      %v334 = vpack.c.b16 %v292, %v290
      %v335 = vpack.c.b16 %v295, %v293
      %v336 = vpack.c.b16 %v296, %v294
      %v337 = vpack.c.b16 %v299, %v297
      %v338 = vpack.c.b16 %v300, %v298
      %v339 = vpack.c.b16 %v303, %v301
      %v340 = vpack.c.b16 %v304, %v302
      %v341 = vpack.c.b16 %v307, %v305
      %v342 = vpack.c.b16 %v308, %v306
      %v343 = vpack.c.b16 %v311, %v309
      %v344 = vpack.c.b16 %v312, %v310
      %v409 = vunpack.c.l.b16 %v185
      %v410 = vunpack.c.h.b16 %v185
      %v411 = vunpack.c.l.b16 %v186
      %v412 = vunpack.c.h.b16 %v186
      %v413 = vunpack.c.l.b16 %v187
      %v414 = vunpack.c.h.b16 %v187
      %v415 = vunpack.c.l.b16 %v188
      %v416 = vunpack.c.h.b16 %v188
      %v417 = vunpack.c.l.b16 %v189
      %v418 = vunpack.c.h.b16 %v189
      %v419 = vunpack.c.l.b16 %v190
      %v420 = vunpack.c.h.b16 %v190
      %v421 = vunpack.c.l.b16 %v191
      %v422 = vunpack.c.h.b16 %v191
      %v423 = vunpack.c.l.b16 %v192
      %v424 = vunpack.c.h.b16 %v192
      %v425 = vunpack.c.l.b16 %v193
      %v426 = vunpack.c.h.b16 %v193
      %v427 = vunpack.c.l.b16 %v194
      %v428 = vunpack.c.h.b16 %v194
      %v429 = vunpack.c.l.b16 %v195
      %v430 = vunpack.c.h.b16 %v195
      %v431 = vunpack.c.l.b16 %v196
      %v432 = vunpack.c.h.b16 %v196
      %v433 = vunpack.c.l.b16 %v197
      %v434 = vunpack.c.h.b16 %v197
      %v435 = vunpack.c.l.b16 %v198
      %v436 = vunpack.c.h.b16 %v198
      %v437 = vunpack.c.l.b16 %v199
      %v438 = vunpack.c.h.b16 %v199
      %v439 = vunpack.c.l.b16 %v200
      %v440 = vunpack.c.h.b16 %v200
      %v441 = vunpack.c.l.b16 %v201
      %v442 = vunpack.c.h.b16 %v201
      %v443 = vunpack.c.l.b16 %v202
      %v444 = vunpack.c.h.b16 %v202
      %v445 = vunpack.c.l.b16 %v203
      %v446 = vunpack.c.h.b16 %v203
      %v447 = vunpack.c.l.b16 %v204
      %v448 = vunpack.c.h.b16 %v204
      %v449 = vunpack.c.l.b16 %v205
      %v450 = vunpack.c.h.b16 %v205
      %v451 = vunpack.c.l.b16 %v206
      %v452 = vunpack.c.h.b16 %v206
      %v453 = vunpack.c.l.b16 %v207
      %v454 = vunpack.c.h.b16 %v207
      %v455 = vunpack.c.l.b16 %v208
      %v456 = vunpack.c.h.b16 %v208
      %v457 = vunpack.c.l.b16 %v209
      %v458 = vunpack.c.h.b16 %v209
      %v459 = vunpack.c.l.b16 %v210
      %v460 = vunpack.c.h.b16 %v210
      %v461 = vunpack.c.l.b16 %v211
      %v462 = vunpack.c.h.b16 %v211
      %v463 = vunpack.c.l.b16 %v212
      %v464 = vunpack.c.h.b16 %v212
      %v465 = vunpack.c.l.b16 %v213
      %v466 = vunpack.c.h.b16 %v213
      %v467 = vunpack.c.l.b16 %v214
      %v468 = vunpack.c.h.b16 %v214
      %v469 = vunpack.c.l.b16 %v215
      %v470 = vunpack.c.h.b16 %v215
      %v471 = vunpack.c.l.b16 %v216
      %v472 = vunpack.c.h.b16 %v216
      %v473 = vpack.c.b16 %v411, %v409
      %v474 = vpack.c.b16 %v412, %v410
      %v475 = vpack.c.b16 %v415, %v413
      %v476 = vpack.c.b16 %v416, %v414
      %v477 = vpack.c.b16 %v419, %v417
      %v478 = vpack.c.b16 %v420, %v418
      %v479 = vpack.c.b16 %v423, %v421
      %v480 = vpack.c.b16 %v424, %v422
      %v481 = vpack.c.b16 %v427, %v425
      %v482 = vpack.c.b16 %v428, %v426
      %v483 = vpack.c.b16 %v431, %v429
      %v484 = vpack.c.b16 %v432, %v430
      %v485 = vpack.c.b16 %v435, %v433
      %v486 = vpack.c.b16 %v436, %v434
      %v487 = vpack.c.b16 %v439, %v437
      %v488 = vpack.c.b16 %v440, %v438
      %v489 = vpack.c.b16 %v443, %v441
      %v490 = vpack.c.b16 %v444, %v442
      %v491 = vpack.c.b16 %v447, %v445
      %v492 = vpack.c.b16 %v448, %v446
      %v493 = vpack.c.b16 %v451, %v449
      %v494 = vpack.c.b16 %v452, %v450
      %v495 = vpack.c.b16 %v455, %v453
      %v496 = vpack.c.b16 %v456, %v454
      %v497 = vpack.c.b16 %v459, %v457
      %v498 = vpack.c.b16 %v460, %v458
      %v499 = vpack.c.b16 %v463, %v461
      %v500 = vpack.c.b16 %v464, %v462
      %v501 = vpack.c.b16 %v467, %v465
      %v502 = vpack.c.b16 %v468, %v466
      %v503 = vpack.c.b16 %v471, %v469
      %v504 = vpack.c.b16 %v472, %v470
      %537 = vmatprep.subr.bf16.mxu0 %v474
      %538 = vmatpush1.bf16.msra.mxu0 %v473
      %539 = vmatprep.subr.bf16.mxu0 %v476
      %540 = vmatpush1.bf16.msra.mxu0 %v475
      %541 = vmatprep.subr.bf16.mxu0 %v478
      %542 = vmatpush1.bf16.msra.mxu0 %v477
      %543 = vmatprep.subr.bf16.mxu0 %v480
      %544 = vmatpush1.bf16.msra.mxu0 %v479
      %545 = vmatprep.subr.bf16.mxu0 %v482
      %546 = vmatpush1.bf16.msra.mxu0 %v481
      %547 = vmatprep.subr.bf16.mxu0 %v484
      %548 = vmatpush1.bf16.msra.mxu0 %v483
      %549 = vmatprep.subr.bf16.mxu0 %v486
      %550 = vmatpush1.bf16.msra.mxu0 %v485
      %551 = vmatprep.subr.bf16.mxu0 %v488
      %552 = vmatpush1.bf16.msra.mxu0 %v487
      %553 = vmatprep.subr.bf16.mxu0 %v490
      %554 = vmatpush1.bf16.msra.mxu0 %v489
      %555 = vmatprep.subr.bf16.mxu0 %v492
      %556 = vmatpush1.bf16.msra.mxu0 %v491
      %557 = vmatprep.subr.bf16.mxu0 %v494
      %558 = vmatpush1.bf16.msra.mxu0 %v493
      %559 = vmatprep.subr.bf16.mxu0 %v496
      %560 = vmatpush1.bf16.msra.mxu0 %v495
      %561 = vmatprep.subr.bf16.mxu0 %v498
      %562 = vmatpush1.bf16.msra.mxu0 %v497
      %563 = vmatprep.subr.bf16.mxu0 %v500
      %564 = vmatpush1.bf16.msra.mxu0 %v499
      %565 = vmatprep.subr.bf16.mxu0 %v502
      %566 = vmatpush1.bf16.msra.mxu0 %v501
      %567 = vmatprep.subr.bf16.mxu0 %v504
      %568 = vmatpush1.bf16.msra.mxu0 %v503
      %569 = vmatprep.mubr.bf16.mxu0 %v314
      %570 = vmatmul.mubr.bf16.gmra.mrb[0].mxu0 %v313
      %v571 = vpop.f32.mrb[0].mxu0
      %v572 = vadd.f32 0.0, %v571
      %v573 = vpop.f32.mrb[0].mxu0
      %v574 = vadd.f32 0.0, %v573
      %v575 = vpop.f32.mrb[0].mxu0
      %v576 = vadd.f32 0.0, %v575
      %v577 = vpop.f32.mrb[0].mxu0
      %v578 = vadd.f32 0.0, %v577
      %579 = vmatprep.mubr.bf16.mxu0 %v316
      %580 = vmatmul.mubr.bf16.gmra.mrb[0].mxu0 %v315
      %v581 = vpop.f32.mrb[0].mxu0
      %v582 = vadd.f32 0.0, %v581
      %v583 = vpop.f32.mrb[0].mxu0
      %v584 = vadd.f32 0.0, %v583
      %v585 = vpop.f32.mrb[0].mxu0
      %v586 = vadd.f32 0.0, %v585
      %v587 = vpop.f32.mrb[0].mxu0
      %v588 = vadd.f32 0.0, %v587
      %589 = vmatprep.mubr.bf16.mxu0 %v318
      %590 = vmatmul.mubr.bf16.gmra.mrb[0].mxu0 %v317
      %v591 = vpop.f32.mrb[0].mxu0
      %v592 = vadd.f32 0.0, %v591
      %v593 = vpop.f32.mrb[0].mxu0
      %v594 = vadd.f32 0.0, %v593
      %v595 = vpop.f32.mrb[0].mxu0
      %v596 = vadd.f32 0.0, %v595
      %v597 = vpop.f32.mrb[0].mxu0
      %v598 = vadd.f32 0.0, %v597
      %599 = vmatprep.mubr.bf16.mxu0 %v320
      %600 = vmatmul.mubr.bf16.gmra.mrb[0].mxu0 %v319
      %v601 = vpop.f32.mrb[0].mxu0
      %v602 = vadd.f32 0.0, %v601
      %v603 = vpop.f32.mrb[0].mxu0
      %v604 = vadd.f32 0.0, %v603
      %v605 = vpop.f32.mrb[0].mxu0
      %v606 = vadd.f32 0.0, %v605
      %v607 = vpop.f32.mrb[0].mxu0
      %v608 = vadd.f32 0.0, %v607
      %609 = vmatprep.mubr.bf16.mxu0 %v322
      %610 = vmatmul.mubr.bf16.gmra.mrb[0].mxu0 %v321
      %v611 = vpop.f32.mrb[0].mxu0
      %v612 = vadd.f32 0.0, %v611
      %v613 = vpop.f32.mrb[0].mxu0
      %v614 = vadd.f32 0.0, %v613
      %v615 = vpop.f32.mrb[0].mxu0
      %v616 = vadd.f32 0.0, %v615
      %v617 = vpop.f32.mrb[0].mxu0
      %v618 = vadd.f32 0.0, %v617
      %619 = vmatprep.mubr.bf16.mxu0 %v324
      %620 = vmatmul.mubr.bf16.gmra.mrb[0].mxu0 %v323
      %v621 = vpop.f32.mrb[0].mxu0
      %v622 = vadd.f32 0.0, %v621
      %v623 = vpop.f32.mrb[0].mxu0
      %v624 = vadd.f32 0.0, %v623
      %v625 = vpop.f32.mrb[0].mxu0
      %v626 = vadd.f32 0.0, %v625
      %v627 = vpop.f32.mrb[0].mxu0
      %v628 = vadd.f32 0.0, %v627
      %629 = vmatprep.mubr.bf16.mxu0 %v326
      %630 = vmatmul.mubr.bf16.gmra.mrb[0].mxu0 %v325
      %v631 = vpop.f32.mrb[0].mxu0
      %v632 = vadd.f32 0.0, %v631
      %v633 = vpop.f32.mrb[0].mxu0
      %v634 = vadd.f32 0.0, %v633
      %v635 = vpop.f32.mrb[0].mxu0
      %v636 = vadd.f32 0.0, %v635
      %v637 = vpop.f32.mrb[0].mxu0
      %v638 = vadd.f32 0.0, %v637
      %639 = vmatprep.mubr.bf16.mxu0 %v328
      %640 = vmatmul.mubr.bf16.gmra.mrb[0].mxu0 %v327
      %v641 = vpop.f32.mrb[0].mxu0
      %v642 = vadd.f32 0.0, %v641
      %v643 = vpop.f32.mrb[0].mxu0
      %v644 = vadd.f32 0.0, %v643
      %v645 = vpop.f32.mrb[0].mxu0
      %v646 = vadd.f32 0.0, %v645
      %v647 = vpop.f32.mrb[0].mxu0
      %v648 = vadd.f32 0.0, %v647
      %649 = vmatprep.mubr.bf16.mxu0 %v330
      %650 = vmatmul.mubr.bf16.gmra.mrb[0].mxu0 %v329
      %v651 = vpop.f32.mrb[0].mxu0
      %v652 = vadd.f32 0.0, %v651
      %v653 = vpop.f32.mrb[0].mxu0
      %v654 = vadd.f32 0.0, %v653
      %v655 = vpop.f32.mrb[0].mxu0
      %v656 = vadd.f32 0.0, %v655
      %v657 = vpop.f32.mrb[0].mxu0
      %v658 = vadd.f32 0.0, %v657
      %659 = vmatprep.mubr.bf16.mxu0 %v332
      %660 = vmatmul.mubr.bf16.gmra.mrb[0].mxu0 %v331
      %v661 = vpop.f32.mrb[0].mxu0
      %v662 = vadd.f32 0.0, %v661
      %v663 = vpop.f32.mrb[0].mxu0
      %v664 = vadd.f32 0.0, %v663
      %v665 = vpop.f32.mrb[0].mxu0
      %v666 = vadd.f32 0.0, %v665
      %v667 = vpop.f32.mrb[0].mxu0
      %v668 = vadd.f32 0.0, %v667
      %669 = vmatprep.mubr.bf16.mxu0 %v334
      %670 = vmatmul.mubr.bf16.gmra.mrb[0].mxu0 %v333
      %v671 = vpop.f32.mrb[0].mxu0
      %v672 = vadd.f32 0.0, %v671
      %v673 = vpop.f32.mrb[0].mxu0
      %v674 = vadd.f32 0.0, %v673
      %v675 = vpop.f32.mrb[0].mxu0
      %v676 = vadd.f32 0.0, %v675
      %v677 = vpop.f32.mrb[0].mxu0
      %v678 = vadd.f32 0.0, %v677
      %679 = vmatprep.mubr.bf16.mxu0 %v336
      %680 = vmatmul.mubr.bf16.gmra.mrb[0].mxu0 %v335
      %v681 = vpop.f32.mrb[0].mxu0
      %v682 = vadd.f32 0.0, %v681
      %v683 = vpop.f32.mrb[0].mxu0
      %v684 = vadd.f32 0.0, %v683
      %v685 = vpop.f32.mrb[0].mxu0
      %v686 = vadd.f32 0.0, %v685
      %v687 = vpop.f32.mrb[0].mxu0
      %v688 = vadd.f32 0.0, %v687
      %689 = vmatprep.mubr.bf16.mxu0 %v338
      %690 = vmatmul.mubr.bf16.gmra.mrb[0].mxu0 %v337
      %v691 = vpop.f32.mrb[0].mxu0
      %v692 = vadd.f32 0.0, %v691
      %v693 = vpop.f32.mrb[0].mxu0
      %v694 = vadd.f32 0.0, %v693
      %v695 = vpop.f32.mrb[0].mxu0
      %v696 = vadd.f32 0.0, %v695
      %v697 = vpop.f32.mrb[0].mxu0
      %v698 = vadd.f32 0.0, %v697
      %699 = vmatprep.mubr.bf16.mxu0 %v340
      %700 = vmatmul.mubr.bf16.gmra.mrb[0].mxu0 %v339
      %v701 = vpop.f32.mrb[0].mxu0
      %v702 = vadd.f32 0.0, %v701
      %v703 = vpop.f32.mrb[0].mxu0
      %v704 = vadd.f32 0.0, %v703
      %v705 = vpop.f32.mrb[0].mxu0
      %v706 = vadd.f32 0.0, %v705
      %v707 = vpop.f32.mrb[0].mxu0
      %v708 = vadd.f32 0.0, %v707
      %709 = vmatprep.mubr.bf16.mxu0 %v342
      %710 = vmatmul.mubr.bf16.gmra.mrb[0].mxu0 %v341
      %v711 = vpop.f32.mrb[0].mxu0
      %v712 = vadd.f32 0.0, %v711
      %v713 = vpop.f32.mrb[0].mxu0
      %v714 = vadd.f32 0.0, %v713
      %v715 = vpop.f32.mrb[0].mxu0
      %v716 = vadd.f32 0.0, %v715
      %v717 = vpop.f32.mrb[0].mxu0
      %v718 = vadd.f32 0.0, %v717
      %719 = vmatprep.mubr.bf16.mxu0 %v344
      %720 = vmatmul.mubr.bf16.gmra.mrb[0].mxu0 %v343
      %v721 = vpop.f32.mrb[0].mxu0
      %v722 = vadd.f32 0.0, %v721
      %v723 = vpop.f32.mrb[0].mxu0
      %v724 = vadd.f32 0.0, %v723
      %v725 = vpop.f32.mrb[0].mxu0
      %v726 = vadd.f32 0.0, %v725
      %v727 = vpop.f32.mrb[0].mxu0
      %v728 = vadd.f32 0.0, %v727
      %729 = vdwg.mxu0
      %v730 = vmul.f32 %v572, 0.125
      %v731 = vmul.f32 %v576, 0.125
      %v732 = vmul.f32 %v582, 0.125
      %v733 = vmul.f32 %v586, 0.125
      %v734 = vmul.f32 %v592, 0.125
      %v735 = vmul.f32 %v596, 0.125
      %v736 = vmul.f32 %v602, 0.125
      %v737 = vmul.f32 %v606, 0.125
      %v738 = vmul.f32 %v612, 0.125
      %v739 = vmul.f32 %v616, 0.125
      %v740 = vmul.f32 %v622, 0.125
      %v741 = vmul.f32 %v626, 0.125
      %v742 = vmul.f32 %v632, 0.125
      %v743 = vmul.f32 %v636, 0.125
      %v744 = vmul.f32 %v642, 0.125
      %v745 = vmul.f32 %v646, 0.125
      %v746 = vmul.f32 %v652, 0.125
      %v747 = vmul.f32 %v656, 0.125
      %v748 = vmul.f32 %v662, 0.125
      %v749 = vmul.f32 %v666, 0.125
      %v750 = vmul.f32 %v672, 0.125
      %v751 = vmul.f32 %v676, 0.125
      %v752 = vmul.f32 %v682, 0.125
      %v753 = vmul.f32 %v686, 0.125
      %v754 = vmul.f32 %v692, 0.125
      %v755 = vmul.f32 %v696, 0.125
      %v756 = vmul.f32 %v702, 0.125
      %v757 = vmul.f32 %v706, 0.125
      %v758 = vmul.f32 %v712, 0.125
      %v759 = vmul.f32 %v716, 0.125
      %v760 = vmul.f32 %v722, 0.125
      %v761 = vmul.f32 %v726, 0.125
      %v762 = vpack.c.bf16 %v731, %v730
      %v763 = vpack.c.bf16 %v733, %v732
      %v764 = vpack.c.bf16 %v735, %v734
      %v765 = vpack.c.bf16 %v737, %v736
      %v766 = vpack.c.bf16 %v739, %v738
      %v767 = vpack.c.bf16 %v741, %v740
      %v768 = vpack.c.bf16 %v743, %v742
      %v769 = vpack.c.bf16 %v745, %v744
      %v770 = vpack.c.bf16 %v747, %v746
      %v771 = vpack.c.bf16 %v749, %v748
      %v772 = vpack.c.bf16 %v751, %v750
      %v773 = vpack.c.bf16 %v753, %v752
      %v774 = vpack.c.bf16 %v755, %v754
      %v775 = vpack.c.bf16 %v757, %v756
      %v776 = vpack.c.bf16 %v759, %v758
      %v777 = vpack.c.bf16 %v761, %v760
      %v778 = vpack.c.bf16 %v576, %v572
      %v779 = vpack.c.bf16 %v586, %v582
      %v780 = vpack.c.bf16 %v596, %v592
      %v781 = vpack.c.bf16 %v606, %v602
      %v782 = vpack.c.bf16 %v616, %v612
      %v783 = vpack.c.bf16 %v626, %v622
      %v784 = vpack.c.bf16 %v636, %v632
      %v785 = vpack.c.bf16 %v646, %v642
      %v786 = vpack.c.bf16 %v656, %v652
      %v787 = vpack.c.bf16 %v666, %v662
      %v788 = vpack.c.bf16 %v676, %v672
      %v789 = vpack.c.bf16 %v686, %v682
      %v790 = vpack.c.bf16 %v696, %v692
      %v791 = vpack.c.bf16 %v706, %v702
      %v792 = vpack.c.bf16 %v716, %v712
      %v793 = vpack.c.bf16 %v726, %v722
      %802 = vrot.lane.b32.xlu0 %v778, 64
      %v803 = vpop.permute.xlu0 %802
      %804 = vrot.lane.b32.xlu0 %v779, 64
      %v805 = vpop.permute.xlu0 %804
      %806 = vrot.lane.b32.xlu0 %v780, 64
      %v807 = vpop.permute.xlu0 %806
      %808 = vrot.lane.b32.xlu0 %v781, 64
      %v809 = vpop.permute.xlu0 %808
      %810 = vrot.lane.b32.xlu0 %v782, 64
      %v811 = vpop.permute.xlu0 %810
      %812 = vrot.lane.b32.xlu0 %v783, 64
      %v813 = vpop.permute.xlu0 %812
      %814 = vrot.lane.b32.xlu0 %v784, 64
      %v815 = vpop.permute.xlu0 %814
      %816 = vrot.lane.b32.xlu0 %v785, 64
      %v817 = vpop.permute.xlu0 %816
      %vm818 = vcmask 523264
      %v820 = vsel %vm818, %v762, 0
      %v823 = vsel %vm818, %v763, 0
      %v826 = vsel %vm818, %v764, 0
      %v829 = vsel %vm818, %v765, 0
      %v832 = vsel %vm818, %v766, 0
      %v835 = vsel %vm818, %v767, 0
      %v838 = vsel %vm818, %v768, 0
      %v841 = vsel %vm818, %v769, 0
      %v844 = vsel %vm818, %v803, 0
      %v847 = vsel %vm818, %v805, 0
      %v850 = vsel %vm818, %v807, 0
      %v853 = vsel %vm818, %v809, 0
      %v856 = vsel %vm818, %v811, 0
      %v859 = vsel %vm818, %v813, 0
      %v862 = vsel %vm818, %v815, 0
      %v865 = vsel %vm818, %v817, 0
      %867 = vmatprep.subr.bf16.mxu0 0
      %868 = vmatpush1.bf16.xpose.msra.mxu0 %v844
      %869 = vmatprep.subr.bf16.mxu0 0
      %870 = vmatpush1.bf16.xpose.msra.mxu0 %v847
      %871 = vmatprep.subr.bf16.mxu0 0
      %872 = vmatpush1.bf16.xpose.msra.mxu0 %v850
      %873 = vmatprep.subr.bf16.mxu0 0
      %874 = vmatpush1.bf16.xpose.msra.mxu0 %v853
      %875 = vmatprep.subr.bf16.mxu0 0
      %876 = vmatpush1.bf16.xpose.msra.mxu0 %v856
      %877 = vmatprep.subr.bf16.mxu0 0
      %878 = vmatpush1.bf16.xpose.msra.mxu0 %v859
      %879 = vmatprep.subr.bf16.mxu0 0
      %880 = vmatpush1.bf16.xpose.msra.mxu0 %v862
      %881 = vmatprep.subr.bf16.mxu0 0
      %882 = vmatpush1.bf16.xpose.msra.mxu0 %v865
      %883 = vmatprep.subr.bf16.mxu0 0
      %884 = vmatpush1.bf16.xpose.msra.mxu0 0
      %885 = vmatprep.subr.bf16.mxu0 0
      %886 = vmatpush1.bf16.xpose.msra.mxu0 0
      %887 = vmatprep.subr.bf16.mxu0 0
      %888 = vmatpush1.bf16.xpose.msra.mxu0 0
      %889 = vmatprep.subr.bf16.mxu0 0
      %890 = vmatpush1.bf16.xpose.msra.mxu0 0
      %891 = vmatprep.subr.bf16.mxu0 0
      %892 = vmatpush1.bf16.xpose.msra.mxu0 0
      %893 = vmatprep.subr.bf16.mxu0 0
      %894 = vmatpush1.bf16.xpose.msra.mxu0 0
      %895 = vmatprep.subr.bf16.mxu0 0
      %896 = vmatpush1.bf16.xpose.msra.mxu0 0
      %897 = vmatprep.subr.bf16.mxu0 0
      %898 = vmatpush1.bf16.xpose.msra.mxu0 0
      %899 = vmatprep.mubr.bf16.mxu0 0
      %900 = vmatmul.mubr.bf16.gmra.mrb[0].mxu0 %v820
      %v901 = vpop.f32.mrb[0].mxu0
      %v902 = vadd.f32 0.0, %v901
      %v903 = vpop.f32.mrb[0].mxu0
      %v904 = vpop.f32.mrb[0].mxu0
      %v905 = vadd.f32 0.0, %v904
      %v906 = vpop.f32.mrb[0].mxu0
      %907 = vmatprep.mubr.bf16.mxu0 0
      %908 = vmatmul.mubr.bf16.gmra.mrb[0].mxu0 %v823
      %v909 = vpop.f32.mrb[0].mxu0
      %v910 = vadd.f32 0.0, %v909
      %v911 = vpop.f32.mrb[0].mxu0
      %v912 = vpop.f32.mrb[0].mxu0
      %v913 = vadd.f32 0.0, %v912
      %v914 = vpop.f32.mrb[0].mxu0
      %915 = vmatprep.mubr.bf16.mxu0 0
      %916 = vmatmul.mubr.bf16.gmra.mrb[0].mxu0 %v826
      %v917 = vpop.f32.mrb[0].mxu0
      %v918 = vadd.f32 0.0, %v917
      %v919 = vpop.f32.mrb[0].mxu0
      %v920 = vpop.f32.mrb[0].mxu0
      %v921 = vadd.f32 0.0, %v920
      %v922 = vpop.f32.mrb[0].mxu0
      %923 = vmatprep.mubr.bf16.mxu0 0
      %924 = vmatmul.mubr.bf16.gmra.mrb[0].mxu0 %v829
      %v925 = vpop.f32.mrb[0].mxu0
      %v926 = vadd.f32 0.0, %v925
      %v927 = vpop.f32.mrb[0].mxu0
      %v928 = vpop.f32.mrb[0].mxu0
      %v929 = vadd.f32 0.0, %v928
      %v930 = vpop.f32.mrb[0].mxu0
      %931 = vmatprep.mubr.bf16.mxu0 0
      %932 = vmatmul.mubr.bf16.gmra.mrb[0].mxu0 %v832
      %v933 = vpop.f32.mrb[0].mxu0
      %v934 = vadd.f32 0.0, %v933
      %v935 = vpop.f32.mrb[0].mxu0
      %v936 = vpop.f32.mrb[0].mxu0
      %v937 = vadd.f32 0.0, %v936
      %v938 = vpop.f32.mrb[0].mxu0
      %939 = vmatprep.mubr.bf16.mxu0 0
      %940 = vmatmul.mubr.bf16.gmra.mrb[0].mxu0 %v835
      %v941 = vpop.f32.mrb[0].mxu0
      %v942 = vadd.f32 0.0, %v941
      %v943 = vpop.f32.mrb[0].mxu0
      %v944 = vpop.f32.mrb[0].mxu0
      %v945 = vadd.f32 0.0, %v944
      %v946 = vpop.f32.mrb[0].mxu0
      %947 = vmatprep.mubr.bf16.mxu0 0
      %948 = vmatmul.mubr.bf16.gmra.mrb[0].mxu0 %v838
      %v949 = vpop.f32.mrb[0].mxu0
      %v950 = vadd.f32 0.0, %v949
      %v951 = vpop.f32.mrb[0].mxu0
      %v952 = vpop.f32.mrb[0].mxu0
      %v953 = vadd.f32 0.0, %v952
      %v954 = vpop.f32.mrb[0].mxu0
      %955 = vmatprep.mubr.bf16.mxu0 0
      %956 = vmatmul.mubr.bf16.gmra.mrb[0].mxu0 %v841
      %v957 = vpop.f32.mrb[0].mxu0
      %v958 = vadd.f32 0.0, %v957
      %v959 = vpop.f32.mrb[0].mxu0
      %v960 = vpop.f32.mrb[0].mxu0
      %v961 = vadd.f32 0.0, %v960
      %v962 = vpop.f32.mrb[0].mxu0
      %963 = vdwg.mxu0
      %972 = vrot.lane.b32.xlu0 %v786, 64
      %v973 = vpop.permute.xlu0 %972
      %974 = vrot.lane.b32.xlu0 %v787, 64
      %v975 = vpop.permute.xlu0 %974
      %976 = vrot.lane.b32.xlu0 %v788, 64
      %v977 = vpop.permute.xlu0 %976
      %978 = vrot.lane.b32.xlu0 %v789, 64
      %v979 = vpop.permute.xlu0 %978
      %980 = vrot.lane.b32.xlu0 %v790, 64
      %v981 = vpop.permute.xlu0 %980
      %982 = vrot.lane.b32.xlu0 %v791, 64
      %v983 = vpop.permute.xlu0 %982
      %984 = vrot.lane.b32.xlu0 %v792, 64
      %v985 = vpop.permute.xlu0 %984
      %986 = vrot.lane.b32.xlu0 %v793, 64
      %v987 = vpop.permute.xlu0 %986
      %v989 = vsel %vm818, %v770, 0
      %v992 = vsel %vm818, %v771, 0
      %v995 = vsel %vm818, %v772, 0
      %v998 = vsel %vm818, %v773, 0
      %v1001 = vsel %vm818, %v774, 0
      %v1004 = vsel %vm818, %v775, 0
      %v1007 = vsel %vm818, %v776, 0
      %v1010 = vsel %vm818, %v777, 0
      %v1013 = vsel %vm818, %v973, 0
      %v1016 = vsel %vm818, %v975, 0
      %v1019 = vsel %vm818, %v977, 0
      %v1022 = vsel %vm818, %v979, 0
      %v1025 = vsel %vm818, %v981, 0
      %v1028 = vsel %vm818, %v983, 0
      %v1031 = vsel %vm818, %v985, 0
      %v1034 = vsel %vm818, %v987, 0
      %1036 = vmatprep.subr.bf16.mxu0 0
      %1037 = vmatpush1.bf16.xpose.msra.mxu0 %v1013
      %1038 = vmatprep.subr.bf16.mxu0 0
      %1039 = vmatpush1.bf16.xpose.msra.mxu0 %v1016
      %1040 = vmatprep.subr.bf16.mxu0 0
      %1041 = vmatpush1.bf16.xpose.msra.mxu0 %v1019
      %1042 = vmatprep.subr.bf16.mxu0 0
      %1043 = vmatpush1.bf16.xpose.msra.mxu0 %v1022
      %1044 = vmatprep.subr.bf16.mxu0 0
      %1045 = vmatpush1.bf16.xpose.msra.mxu0 %v1025
      %1046 = vmatprep.subr.bf16.mxu0 0
      %1047 = vmatpush1.bf16.xpose.msra.mxu0 %v1028
      %1048 = vmatprep.subr.bf16.mxu0 0
      %1049 = vmatpush1.bf16.xpose.msra.mxu0 %v1031
      %1050 = vmatprep.subr.bf16.mxu0 0
      %1051 = vmatpush1.bf16.xpose.msra.mxu0 %v1034
      %1052 = vmatprep.subr.bf16.mxu0 0
      %1053 = vmatpush1.bf16.xpose.msra.mxu0 0
      %1054 = vmatprep.subr.bf16.mxu0 0
      %1055 = vmatpush1.bf16.xpose.msra.mxu0 0
      %1056 = vmatprep.subr.bf16.mxu0 0
      %1057 = vmatpush1.bf16.xpose.msra.mxu0 0
      %1058 = vmatprep.subr.bf16.mxu0 0
      %1059 = vmatpush1.bf16.xpose.msra.mxu0 0
      %1060 = vmatprep.subr.bf16.mxu0 0
      %1061 = vmatpush1.bf16.xpose.msra.mxu0 0
      %1062 = vmatprep.subr.bf16.mxu0 0
      %1063 = vmatpush1.bf16.xpose.msra.mxu0 0
      %1064 = vmatprep.subr.bf16.mxu0 0
      %1065 = vmatpush1.bf16.xpose.msra.mxu0 0
      %1066 = vmatprep.subr.bf16.mxu0 0
      %1067 = vmatpush1.bf16.xpose.msra.mxu0 0
      %1068 = vmatprep.mubr.bf16.mxu0 0
      %1069 = vmatmul.mubr.bf16.gmra.mrb[0].mxu0 %v989
      %v1070 = vpop.f32.mrb[0].mxu0
      %v1071 = vadd.f32 0.0, %v1070
      %v1072 = vpop.f32.mrb[0].mxu0
      %v1073 = vpop.f32.mrb[0].mxu0
      %v1074 = vadd.f32 0.0, %v1073
      %v1075 = vpop.f32.mrb[0].mxu0
      %1076 = vmatprep.mubr.bf16.mxu0 0
      %1077 = vmatmul.mubr.bf16.gmra.mrb[0].mxu0 %v992
      %v1078 = vpop.f32.mrb[0].mxu0
      %v1079 = vadd.f32 0.0, %v1078
      %v1080 = vpop.f32.mrb[0].mxu0
      %v1081 = vpop.f32.mrb[0].mxu0
      %v1082 = vadd.f32 0.0, %v1081
      %v1083 = vpop.f32.mrb[0].mxu0
      %1084 = vmatprep.mubr.bf16.mxu0 0
      %1085 = vmatmul.mubr.bf16.gmra.mrb[0].mxu0 %v995
      %v1086 = vpop.f32.mrb[0].mxu0
      %v1087 = vadd.f32 0.0, %v1086
      %v1088 = vpop.f32.mrb[0].mxu0
      %v1089 = vpop.f32.mrb[0].mxu0
      %v1090 = vadd.f32 0.0, %v1089
      %v1091 = vpop.f32.mrb[0].mxu0
      %1092 = vmatprep.mubr.bf16.mxu0 0
      %1093 = vmatmul.mubr.bf16.gmra.mrb[0].mxu0 %v998
      %v1094 = vpop.f32.mrb[0].mxu0
      %v1095 = vadd.f32 0.0, %v1094
      %v1096 = vpop.f32.mrb[0].mxu0
      %v1097 = vpop.f32.mrb[0].mxu0
      %v1098 = vadd.f32 0.0, %v1097
      %v1099 = vpop.f32.mrb[0].mxu0
      %1100 = vmatprep.mubr.bf16.mxu0 0
      %1101 = vmatmul.mubr.bf16.gmra.mrb[0].mxu0 %v1001
      %v1102 = vpop.f32.mrb[0].mxu0
      %v1103 = vadd.f32 0.0, %v1102
      %v1104 = vpop.f32.mrb[0].mxu0
      %v1105 = vpop.f32.mrb[0].mxu0
      %v1106 = vadd.f32 0.0, %v1105
      %v1107 = vpop.f32.mrb[0].mxu0
      %1108 = vmatprep.mubr.bf16.mxu0 0
      %1109 = vmatmul.mubr.bf16.gmra.mrb[0].mxu0 %v1004
      %v1110 = vpop.f32.mrb[0].mxu0
      %v1111 = vadd.f32 0.0, %v1110
      %v1112 = vpop.f32.mrb[0].mxu0
      %v1113 = vpop.f32.mrb[0].mxu0
      %v1114 = vadd.f32 0.0, %v1113
      %v1115 = vpop.f32.mrb[0].mxu0
      %1116 = vmatprep.mubr.bf16.mxu0 0
      %1117 = vmatmul.mubr.bf16.gmra.mrb[0].mxu0 %v1007
      %v1118 = vpop.f32.mrb[0].mxu0
      %v1119 = vadd.f32 0.0, %v1118
      %v1120 = vpop.f32.mrb[0].mxu0
      %v1121 = vpop.f32.mrb[0].mxu0
      %v1122 = vadd.f32 0.0, %v1121
      %v1123 = vpop.f32.mrb[0].mxu0
      %1124 = vmatprep.mubr.bf16.mxu0 0
      %1125 = vmatmul.mubr.bf16.gmra.mrb[0].mxu0 %v1010
      %v1126 = vpop.f32.mrb[0].mxu0
      %v1127 = vadd.f32 0.0, %v1126
      %v1128 = vpop.f32.mrb[0].mxu0
      %v1129 = vpop.f32.mrb[0].mxu0
      %v1130 = vadd.f32 0.0, %v1129
      %v1131 = vpop.f32.mrb[0].mxu0
      %1132 = vdwg.mxu0
      %v1133 = vlaneseq
      %v1134 = vshrl.u32 %v1133, 7
      %v1135 = vadd.s32 %v1134, 8
      %v1136 = vadd.s32 %v1134, 16
      %v1137 = vadd.s32 %v1134, 24
      %v1138 = vadd.s32 %v1134, 32
      %v1139 = vadd.s32 %v1134, 40
      %v1140 = vadd.s32 %v1134, 48
      %v1141 = vadd.s32 %v1134, 56
      %v1142 = vadd.s32 %v1134, 64
      %v1143 = vadd.s32 %v1134, 72
      %v1144 = vadd.s32 %v1134, 80
      %v1145 = vadd.s32 %v1134, 88
      %v1146 = vadd.s32 %v1134, 96
      %v1147 = vadd.s32 %v1134, 104
      %v1148 = vadd.s32 %v1134, 112
      %v1149 = vadd.s32 %v1134, 120
      %v1150 = vlaneseq
      %v1151 = vand.u32 %v1150, 127
      %vm1152 = vcmp.le.s32.totalorder %v1151, %v1134
      %vm1153 = vcmp.le.s32.totalorder %v1151, %v1135
      %vm1154 = vcmp.le.s32.totalorder %v1151, %v1136
      %vm1155 = vcmp.le.s32.totalorder %v1151, %v1137
      %vm1156 = vcmp.le.s32.totalorder %v1151, %v1138
      %vm1157 = vcmp.le.s32.totalorder %v1151, %v1139
      %vm1158 = vcmp.le.s32.totalorder %v1151, %v1140
      %vm1159 = vcmp.le.s32.totalorder %v1151, %v1141
      %vm1160 = vcmp.le.s32.totalorder %v1151, %v1142
      %vm1161 = vcmp.le.s32.totalorder %v1151, %v1143
      %vm1162 = vcmp.le.s32.totalorder %v1151, %v1144
      %vm1163 = vcmp.le.s32.totalorder %v1151, %v1145
      %vm1164 = vcmp.le.s32.totalorder %v1151, %v1146
      %vm1165 = vcmp.le.s32.totalorder %v1151, %v1147
      %vm1166 = vcmp.le.s32.totalorder %v1151, %v1148
      %vm1167 = vcmp.le.s32.totalorder %v1151, %v1149
      %v1168 = vsel %vm1152, 1, 0
      %v1169 = vsel %vm1153, 1, 0
      %v1170 = vsel %vm1154, 1, 0
      %v1171 = vsel %vm1155, 1, 0
      %v1172 = vsel %vm1156, 1, 0
      %v1173 = vsel %vm1157, 1, 0
      %v1174 = vsel %vm1158, 1, 0
      %v1175 = vsel %vm1159, 1, 0
      %v1176 = vsel %vm1160, 1, 0
      %v1177 = vsel %vm1161, 1, 0
      %v1178 = vsel %vm1162, 1, 0
      %v1179 = vsel %vm1163, 1, 0
      %v1180 = vsel %vm1164, 1, 0
      %v1181 = vsel %vm1165, 1, 0
      %v1182 = vsel %vm1166, 1, 0
      %v1183 = vsel %vm1167, 1, 0
      %vm1184 = vcmp.eq.s32.totalorder %v1168, 1
      %vm1185 = vcmp.eq.s32.totalorder %v1169, 1
      %vm1186 = vcmp.eq.s32.totalorder %v1170, 1
      %vm1187 = vcmp.eq.s32.totalorder %v1171, 1
      %vm1188 = vcmp.eq.s32.totalorder %v1172, 1
      %vm1189 = vcmp.eq.s32.totalorder %v1173, 1
      %vm1190 = vcmp.eq.s32.totalorder %v1174, 1
      %vm1191 = vcmp.eq.s32.totalorder %v1175, 1
      %vm1192 = vcmp.eq.s32.totalorder %v1176, 1
      %vm1193 = vcmp.eq.s32.totalorder %v1177, 1
      %vm1194 = vcmp.eq.s32.totalorder %v1178, 1
      %vm1195 = vcmp.eq.s32.totalorder %v1179, 1
      %vm1196 = vcmp.eq.s32.totalorder %v1180, 1
      %vm1197 = vcmp.eq.s32.totalorder %v1181, 1
      %vm1198 = vcmp.eq.s32.totalorder %v1182, 1
      %vm1199 = vcmp.eq.s32.totalorder %v1183, 1
      %v1200 = vsel %vm1184, %v902, -inf
      %v1201 = vsel %vm1185, %v905, -inf
      %v1202 = vsel %vm1186, %v910, -inf
      %v1203 = vsel %vm1187, %v913, -inf
      %v1204 = vsel %vm1188, %v918, -inf
      %v1205 = vsel %vm1189, %v921, -inf
      %v1206 = vsel %vm1190, %v926, -inf
      %v1207 = vsel %vm1191, %v929, -inf
      %v1208 = vsel %vm1192, %v934, -inf
      %v1209 = vsel %vm1193, %v937, -inf
      %v1210 = vsel %vm1194, %v942, -inf
      %v1211 = vsel %vm1195, %v945, -inf
      %v1212 = vsel %vm1196, %v950, -inf
      %v1213 = vsel %vm1197, %v953, -inf
      %v1214 = vsel %vm1198, %v958, -inf
      %v1215 = vsel %vm1199, %v961, -inf
      %v1216 = vsel %vm1184, %v1071, -inf
      %v1217 = vsel %vm1185, %v1074, -inf
      %v1218 = vsel %vm1186, %v1079, -inf
      %v1219 = vsel %vm1187, %v1082, -inf
      %v1220 = vsel %vm1188, %v1087, -inf
      %v1221 = vsel %vm1189, %v1090, -inf
      %v1222 = vsel %vm1190, %v1095, -inf
      %v1223 = vsel %vm1191, %v1098, -inf
      %v1224 = vsel %vm1192, %v1103, -inf
      %v1225 = vsel %vm1193, %v1106, -inf
      %v1226 = vsel %vm1194, %v1111, -inf
      %v1227 = vsel %vm1195, %v1114, -inf
      %v1228 = vsel %vm1196, %v1119, -inf
      %v1229 = vsel %vm1197, %v1122, -inf
      %v1230 = vsel %vm1198, %v1127, -inf
      %v1231 = vsel %vm1199, %v1130, -inf
      %1232 = vmax.xlane.f32.xlu0 %v1200
      %v1233 = vpop.xlane.xlu0 %1232
      %1234 = vmax.xlane.f32.xlu0 %v1201
      %v1235 = vpop.xlane.xlu0 %1234
      %1236 = vmax.xlane.f32.xlu0 %v1202
      %v1237 = vpop.xlane.xlu0 %1236
      %1238 = vmax.xlane.f32.xlu0 %v1203
      %v1239 = vpop.xlane.xlu0 %1238
      %1240 = vmax.xlane.f32.xlu0 %v1204
      %v1241 = vpop.xlane.xlu0 %1240
      %1242 = vmax.xlane.f32.xlu0 %v1205
      %v1243 = vpop.xlane.xlu0 %1242
      %1244 = vmax.xlane.f32.xlu0 %v1206
      %v1245 = vpop.xlane.xlu0 %1244
      %1246 = vmax.xlane.f32.xlu0 %v1207
      %v1247 = vpop.xlane.xlu0 %1246
      %1248 = vmax.xlane.f32.xlu0 %v1208
      %v1249 = vpop.xlane.xlu0 %1248
      %1250 = vmax.xlane.f32.xlu0 %v1209
      %v1251 = vpop.xlane.xlu0 %1250
      %1252 = vmax.xlane.f32.xlu0 %v1210
      %v1253 = vpop.xlane.xlu0 %1252
      %1254 = vmax.xlane.f32.xlu0 %v1211
      %v1255 = vpop.xlane.xlu0 %1254
      %1256 = vmax.xlane.f32.xlu0 %v1212
      %v1257 = vpop.xlane.xlu0 %1256
      %1258 = vmax.xlane.f32.xlu0 %v1213
      %v1259 = vpop.xlane.xlu0 %1258
      %1260 = vmax.xlane.f32.xlu0 %v1214
      %v1261 = vpop.xlane.xlu0 %1260
      %1262 = vmax.xlane.f32.xlu0 %v1215
      %v1263 = vpop.xlane.xlu0 %1262
      %1264 = vmax.xlane.f32.xlu0 %v1216
      %v1265 = vpop.xlane.xlu0 %1264
      %1266 = vmax.xlane.f32.xlu0 %v1217
      %v1267 = vpop.xlane.xlu0 %1266
      %1268 = vmax.xlane.f32.xlu0 %v1218
      %v1269 = vpop.xlane.xlu0 %1268
      %1270 = vmax.xlane.f32.xlu0 %v1219
      %v1271 = vpop.xlane.xlu0 %1270
      %1272 = vmax.xlane.f32.xlu0 %v1220
      %v1273 = vpop.xlane.xlu0 %1272
      %1274 = vmax.xlane.f32.xlu0 %v1221
      %v1275 = vpop.xlane.xlu0 %1274
      %1276 = vmax.xlane.f32.xlu0 %v1222
      %v1277 = vpop.xlane.xlu0 %1276
      %1278 = vmax.xlane.f32.xlu0 %v1223
      %v1279 = vpop.xlane.xlu0 %1278
      %1280 = vmax.xlane.f32.xlu0 %v1224
      %v1281 = vpop.xlane.xlu0 %1280
      %1282 = vmax.xlane.f32.xlu0 %v1225
      %v1283 = vpop.xlane.xlu0 %1282
      %1284 = vmax.xlane.f32.xlu0 %v1226
      %v1285 = vpop.xlane.xlu0 %1284
      %1286 = vmax.xlane.f32.xlu0 %v1227
      %v1287 = vpop.xlane.xlu0 %1286
      %1288 = vmax.xlane.f32.xlu0 %v1228
      %v1289 = vpop.xlane.xlu0 %1288
      %1290 = vmax.xlane.f32.xlu0 %v1229
      %v1291 = vpop.xlane.xlu0 %1290
      %1292 = vmax.xlane.f32.xlu0 %v1230
      %v1293 = vpop.xlane.xlu0 %1292
      %1294 = vmax.xlane.f32.xlu0 %v1231
      %v1295 = vpop.xlane.xlu0 %1294
      %v1296 = vsub.f32 %v1200, %v1233
      %v1297 = vsub.f32 %v1201, %v1235
      %v1298 = vsub.f32 %v1202, %v1237
      %v1299 = vsub.f32 %v1203, %v1239
      %v1300 = vsub.f32 %v1204, %v1241
      %v1301 = vsub.f32 %v1205, %v1243
      %v1302 = vsub.f32 %v1206, %v1245
      %v1303 = vsub.f32 %v1207, %v1247
      %v1304 = vsub.f32 %v1208, %v1249
      %v1305 = vsub.f32 %v1209, %v1251
      %v1306 = vsub.f32 %v1210, %v1253
      %v1307 = vsub.f32 %v1211, %v1255
      %v1308 = vsub.f32 %v1212, %v1257
      %v1309 = vsub.f32 %v1213, %v1259
      %v1310 = vsub.f32 %v1214, %v1261
      %v1311 = vsub.f32 %v1215, %v1263
      %v1312 = vsub.f32 %v1216, %v1265
      %v1313 = vsub.f32 %v1217, %v1267
      %v1314 = vsub.f32 %v1218, %v1269
      %v1315 = vsub.f32 %v1219, %v1271
      %v1316 = vsub.f32 %v1220, %v1273
      %v1317 = vsub.f32 %v1221, %v1275
      %v1318 = vsub.f32 %v1222, %v1277
      %v1319 = vsub.f32 %v1223, %v1279
      %v1320 = vsub.f32 %v1224, %v1281
      %v1321 = vsub.f32 %v1225, %v1283
      %v1322 = vsub.f32 %v1226, %v1285
      %v1323 = vsub.f32 %v1227, %v1287
      %v1324 = vsub.f32 %v1228, %v1289
      %v1325 = vsub.f32 %v1229, %v1291
      %v1326 = vsub.f32 %v1230, %v1293
      %v1327 = vsub.f32 %v1231, %v1295
      %v1328 = vmul.f32 %v1296, 1.442695
      %v1329 = vpow.pop %v1328
      %v1330 = vmul.f32 %v1297, 1.442695
      %v1331 = vpow.pop %v1330
      %v1332 = vmul.f32 %v1298, 1.442695
      %v1333 = vpow.pop %v1332
      %v1334 = vmul.f32 %v1299, 1.442695
      %v1335 = vpow.pop %v1334
      %v1336 = vmul.f32 %v1300, 1.442695
      %v1337 = vpow.pop %v1336
      %v1338 = vmul.f32 %v1301, 1.442695
      %v1339 = vpow.pop %v1338
      %v1340 = vmul.f32 %v1302, 1.442695
      %v1341 = vpow.pop %v1340
      %v1342 = vmul.f32 %v1303, 1.442695
      %v1343 = vpow.pop %v1342
      %v1344 = vmul.f32 %v1304, 1.442695
      %v1345 = vpow.pop %v1344
      %v1346 = vmul.f32 %v1305, 1.442695
      %v1347 = vpow.pop %v1346
      %v1348 = vmul.f32 %v1306, 1.442695
      %v1349 = vpow.pop %v1348
      %v1350 = vmul.f32 %v1307, 1.442695
      %v1351 = vpow.pop %v1350
      %v1352 = vmul.f32 %v1308, 1.442695
      %v1353 = vpow.pop %v1352
      %v1354 = vmul.f32 %v1309, 1.442695
      %v1355 = vpow.pop %v1354
      %v1356 = vmul.f32 %v1310, 1.442695
      %v1357 = vpow.pop %v1356
      %v1358 = vmul.f32 %v1311, 1.442695
      %v1359 = vpow.pop %v1358
      %v1360 = vmul.f32 %v1312, 1.442695
      %v1361 = vpow.pop %v1360
      %v1362 = vmul.f32 %v1313, 1.442695
      %v1363 = vpow.pop %v1362
      %v1364 = vmul.f32 %v1314, 1.442695
      %v1365 = vpow.pop %v1364
      %v1366 = vmul.f32 %v1315, 1.442695
      %v1367 = vpow.pop %v1366
      %v1368 = vmul.f32 %v1316, 1.442695
      %v1369 = vpow.pop %v1368
      %v1370 = vmul.f32 %v1317, 1.442695
      %v1371 = vpow.pop %v1370
      %v1372 = vmul.f32 %v1318, 1.442695
      %v1373 = vpow.pop %v1372
      %v1374 = vmul.f32 %v1319, 1.442695
      %v1375 = vpow.pop %v1374
      %v1376 = vmul.f32 %v1320, 1.442695
      %v1377 = vpow.pop %v1376
      %v1378 = vmul.f32 %v1321, 1.442695
      %v1379 = vpow.pop %v1378
      %v1380 = vmul.f32 %v1322, 1.442695
      %v1381 = vpow.pop %v1380
      %v1382 = vmul.f32 %v1323, 1.442695
      %v1383 = vpow.pop %v1382
      %v1384 = vmul.f32 %v1324, 1.442695
      %v1385 = vpow.pop %v1384
      %v1386 = vmul.f32 %v1325, 1.442695
      %v1387 = vpow.pop %v1386
      %v1388 = vmul.f32 %v1326, 1.442695
      %v1389 = vpow.pop %v1388
      %v1390 = vmul.f32 %v1327, 1.442695
      %v1391 = vpow.pop %v1390
      %1392 = vadd.xlane.f32.xlu0 %v1329
      %v1393 = vpop.xlane.xlu0 %1392
      %1394 = vadd.xlane.f32.xlu0 %v1331
      %v1395 = vpop.xlane.xlu0 %1394
      %1396 = vadd.xlane.f32.xlu0 %v1333
      %v1397 = vpop.xlane.xlu0 %1396
      %1398 = vadd.xlane.f32.xlu0 %v1335
      %v1399 = vpop.xlane.xlu0 %1398
      %1400 = vadd.xlane.f32.xlu0 %v1337
      %v1401 = vpop.xlane.xlu0 %1400
      %1402 = vadd.xlane.f32.xlu0 %v1339
      %v1403 = vpop.xlane.xlu0 %1402
      %1404 = vadd.xlane.f32.xlu0 %v1341
      %v1405 = vpop.xlane.xlu0 %1404
      %1406 = vadd.xlane.f32.xlu0 %v1343
      %v1407 = vpop.xlane.xlu0 %1406
      %1408 = vadd.xlane.f32.xlu0 %v1345
      %v1409 = vpop.xlane.xlu0 %1408
      %1410 = vadd.xlane.f32.xlu0 %v1347
      %v1411 = vpop.xlane.xlu0 %1410
      %1412 = vadd.xlane.f32.xlu0 %v1349
      %v1413 = vpop.xlane.xlu0 %1412
      %1414 = vadd.xlane.f32.xlu0 %v1351
      %v1415 = vpop.xlane.xlu0 %1414
      %1416 = vadd.xlane.f32.xlu0 %v1353
      %v1417 = vpop.xlane.xlu0 %1416
      %1418 = vadd.xlane.f32.xlu0 %v1355
      %v1419 = vpop.xlane.xlu0 %1418
      %1420 = vadd.xlane.f32.xlu0 %v1357
      %v1421 = vpop.xlane.xlu0 %1420
      %1422 = vadd.xlane.f32.xlu0 %v1359
      %v1423 = vpop.xlane.xlu0 %1422
      %1424 = vadd.xlane.f32.xlu0 %v1361
      %v1425 = vpop.xlane.xlu0 %1424
      %1426 = vadd.xlane.f32.xlu0 %v1363
      %v1427 = vpop.xlane.xlu0 %1426
      %1428 = vadd.xlane.f32.xlu0 %v1365
      %v1429 = vpop.xlane.xlu0 %1428
      %1430 = vadd.xlane.f32.xlu0 %v1367
      %v1431 = vpop.xlane.xlu0 %1430
      %1432 = vadd.xlane.f32.xlu0 %v1369
      %v1433 = vpop.xlane.xlu0 %1432
      %1434 = vadd.xlane.f32.xlu0 %v1371
      %v1435 = vpop.xlane.xlu0 %1434
      %1436 = vadd.xlane.f32.xlu0 %v1373
      %v1437 = vpop.xlane.xlu0 %1436
      %1438 = vadd.xlane.f32.xlu0 %v1375
      %v1439 = vpop.xlane.xlu0 %1438
      %1440 = vadd.xlane.f32.xlu0 %v1377
      %v1441 = vpop.xlane.xlu0 %1440
      %1442 = vadd.xlane.f32.xlu0 %v1379
      %v1443 = vpop.xlane.xlu0 %1442
      %1444 = vadd.xlane.f32.xlu0 %v1381
      %v1445 = vpop.xlane.xlu0 %1444
      %1446 = vadd.xlane.f32.xlu0 %v1383
      %v1447 = vpop.xlane.xlu0 %1446
      %1448 = vadd.xlane.f32.xlu0 %v1385
      %v1449 = vpop.xlane.xlu0 %1448
      %1450 = vadd.xlane.f32.xlu0 %v1387
      %v1451 = vpop.xlane.xlu0 %1450
      %1452 = vadd.xlane.f32.xlu0 %v1389
      %v1453 = vpop.xlane.xlu0 %1452
      %1454 = vadd.xlane.f32.xlu0 %v1391
      %v1455 = vpop.xlane.xlu0 %1454
      %v1456 = vpack.c.bf16 %v1331, %v1329
      %v1457 = vpack.c.bf16 %v1335, %v1333
      %v1458 = vpack.c.bf16 %v1339, %v1337
      %v1459 = vpack.c.bf16 %v1343, %v1341
      %v1460 = vpack.c.bf16 %v1347, %v1345
      %v1461 = vpack.c.bf16 %v1351, %v1349
      %v1462 = vpack.c.bf16 %v1355, %v1353
      %v1463 = vpack.c.bf16 %v1359, %v1357
      %v1464 = vpack.c.bf16 %v1363, %v1361
      %v1465 = vpack.c.bf16 %v1367, %v1365
      %v1466 = vpack.c.bf16 %v1371, %v1369
      %v1467 = vpack.c.bf16 %v1375, %v1373
      %v1468 = vpack.c.bf16 %v1379, %v1377
      %v1469 = vpack.c.bf16 %v1383, %v1381
      %v1470 = vpack.c.bf16 %v1387, %v1385
      %v1471 = vpack.c.bf16 %v1391, %v1389
      %v1472 = vpack.c.bf16 %v578, %v574
      %v1473 = vpack.c.bf16 %v588, %v584
      %v1474 = vpack.c.bf16 %v598, %v594
      %v1475 = vpack.c.bf16 %v608, %v604
      %v1476 = vpack.c.bf16 %v618, %v614
      %v1477 = vpack.c.bf16 %v628, %v624
      %v1478 = vpack.c.bf16 %v638, %v634
      %v1479 = vpack.c.bf16 %v648, %v644
      %v1480 = vpack.c.bf16 %v658, %v654
      %v1481 = vpack.c.bf16 %v668, %v664
      %v1482 = vpack.c.bf16 %v678, %v674
      %v1483 = vpack.c.bf16 %v688, %v684
      %v1484 = vpack.c.bf16 %v698, %v694
      %v1485 = vpack.c.bf16 %v708, %v704
      %v1486 = vpack.c.bf16 %v718, %v714
      %v1487 = vpack.c.bf16 %v728, %v724
      %1488 = vmatprep.subr.bf16.mxu0 0
      %1489 = vmatpush1.bf16.msra.mxu0 %v1472
      %1490 = vmatprep.subr.bf16.mxu0 0
      %1491 = vmatpush1.bf16.msra.mxu0 %v1473
      %1492 = vmatprep.subr.bf16.mxu0 0
      %1493 = vmatpush1.bf16.msra.mxu0 %v1474
      %1494 = vmatprep.subr.bf16.mxu0 0
      %1495 = vmatpush1.bf16.msra.mxu0 %v1475
      %1496 = vmatprep.subr.bf16.mxu0 0
      %1497 = vmatpush1.bf16.msra.mxu0 %v1476
      %1498 = vmatprep.subr.bf16.mxu0 0
      %1499 = vmatpush1.bf16.msra.mxu0 %v1477
      %1500 = vmatprep.subr.bf16.mxu0 0
      %1501 = vmatpush1.bf16.msra.mxu0 %v1478
      %1502 = vmatprep.subr.bf16.mxu0 0
      %1503 = vmatpush1.bf16.msra.mxu0 %v1479
      %1504 = vmatprep.subr.bf16.mxu0 0
      %1505 = vmatpush1.bf16.msra.mxu0 0
      %1506 = vmatprep.subr.bf16.mxu0 0
      %1507 = vmatpush1.bf16.msra.mxu0 0
      %1508 = vmatprep.subr.bf16.mxu0 0
      %1509 = vmatpush1.bf16.msra.mxu0 0
      %1510 = vmatprep.subr.bf16.mxu0 0
      %1511 = vmatpush1.bf16.msra.mxu0 0
      %1512 = vmatprep.subr.bf16.mxu0 0
      %1513 = vmatpush1.bf16.msra.mxu0 0
      %1514 = vmatprep.subr.bf16.mxu0 0
      %1515 = vmatpush1.bf16.msra.mxu0 0
      %1516 = vmatprep.subr.bf16.mxu0 0
      %1517 = vmatpush1.bf16.msra.mxu0 0
      %1518 = vmatprep.subr.bf16.mxu0 0
      %1519 = vmatpush1.bf16.msra.mxu0 0
      %1520 = vmatprep.mubr.bf16.mxu0 0
      %1521 = vmatmul.mubr.bf16.gmra.mrb[0].mxu0 %v1456
      %v1522 = vpop.f32.mrb[0].mxu0
      %v1523 = vadd.f32 0.0, %v1522
      %v1524 = vpop.f32.mrb[0].mxu0
      %v1525 = vpop.f32.mrb[0].mxu0
      %v1526 = vadd.f32 0.0, %v1525
      %v1527 = vpop.f32.mrb[0].mxu0
      %1528 = vmatprep.mubr.bf16.mxu0 0
      %1529 = vmatmul.mubr.bf16.gmra.mrb[0].mxu0 %v1457
      %v1530 = vpop.f32.mrb[0].mxu0
      %v1531 = vadd.f32 0.0, %v1530
      %v1532 = vpop.f32.mrb[0].mxu0
      %v1533 = vpop.f32.mrb[0].mxu0
      %v1534 = vadd.f32 0.0, %v1533
      %v1535 = vpop.f32.mrb[0].mxu0
      %1536 = vmatprep.mubr.bf16.mxu0 0
      %1537 = vmatmul.mubr.bf16.gmra.mrb[0].mxu0 %v1458
      %v1538 = vpop.f32.mrb[0].mxu0
      %v1539 = vadd.f32 0.0, %v1538
      %v1540 = vpop.f32.mrb[0].mxu0
      %v1541 = vpop.f32.mrb[0].mxu0
      %v1542 = vadd.f32 0.0, %v1541
      %v1543 = vpop.f32.mrb[0].mxu0
      %1544 = vmatprep.mubr.bf16.mxu0 0
      %1545 = vmatmul.mubr.bf16.gmra.mrb[0].mxu0 %v1459
      %v1546 = vpop.f32.mrb[0].mxu0
      %v1547 = vadd.f32 0.0, %v1546
      %v1548 = vpop.f32.mrb[0].mxu0
      %v1549 = vpop.f32.mrb[0].mxu0
      %v1550 = vadd.f32 0.0, %v1549
      %v1551 = vpop.f32.mrb[0].mxu0
      %1552 = vmatprep.mubr.bf16.mxu0 0
      %1553 = vmatmul.mubr.bf16.gmra.mrb[0].mxu0 %v1460
      %v1554 = vpop.f32.mrb[0].mxu0
      %v1555 = vadd.f32 0.0, %v1554
      %v1556 = vpop.f32.mrb[0].mxu0
      %v1557 = vpop.f32.mrb[0].mxu0
      %v1558 = vadd.f32 0.0, %v1557
      %v1559 = vpop.f32.mrb[0].mxu0
      %1560 = vmatprep.mubr.bf16.mxu0 0
      %1561 = vmatmul.mubr.bf16.gmra.mrb[0].mxu0 %v1461
      %v1562 = vpop.f32.mrb[0].mxu0
      %v1563 = vadd.f32 0.0, %v1562
      %v1564 = vpop.f32.mrb[0].mxu0
      %v1565 = vpop.f32.mrb[0].mxu0
      %v1566 = vadd.f32 0.0, %v1565
      %v1567 = vpop.f32.mrb[0].mxu0
      %1568 = vmatprep.mubr.bf16.mxu0 0
      %1569 = vmatmul.mubr.bf16.gmra.mrb[0].mxu0 %v1462
      %v1570 = vpop.f32.mrb[0].mxu0
      %v1571 = vadd.f32 0.0, %v1570
      %v1572 = vpop.f32.mrb[0].mxu0
      %v1573 = vpop.f32.mrb[0].mxu0
      %v1574 = vadd.f32 0.0, %v1573
      %v1575 = vpop.f32.mrb[0].mxu0
      %1576 = vmatprep.mubr.bf16.mxu0 0
      %1577 = vmatmul.mubr.bf16.gmra.mrb[0].mxu0 %v1463
      %v1578 = vpop.f32.mrb[0].mxu0
      %v1579 = vadd.f32 0.0, %v1578
      %v1580 = vpop.f32.mrb[0].mxu0
      %v1581 = vpop.f32.mrb[0].mxu0
      %v1582 = vadd.f32 0.0, %v1581
      %v1583 = vpop.f32.mrb[0].mxu0
      %1584 = vdwg.mxu0
      %1585 = vmatprep.subr.bf16.mxu0 0
      %1586 = vmatpush1.bf16.msra.mxu0 %v1480
      %1587 = vmatprep.subr.bf16.mxu0 0
      %1588 = vmatpush1.bf16.msra.mxu0 %v1481
      %1589 = vmatprep.subr.bf16.mxu0 0
      %1590 = vmatpush1.bf16.msra.mxu0 %v1482
      %1591 = vmatprep.subr.bf16.mxu0 0
      %1592 = vmatpush1.bf16.msra.mxu0 %v1483
      %1593 = vmatprep.subr.bf16.mxu0 0
      %1594 = vmatpush1.bf16.msra.mxu0 %v1484
      %1595 = vmatprep.subr.bf16.mxu0 0
      %1596 = vmatpush1.bf16.msra.mxu0 %v1485
      %1597 = vmatprep.subr.bf16.mxu0 0
      %1598 = vmatpush1.bf16.msra.mxu0 %v1486
      %1599 = vmatprep.subr.bf16.mxu0 0
      %1600 = vmatpush1.bf16.msra.mxu0 %v1487
      %1601 = vmatprep.subr.bf16.mxu0 0
      %1602 = vmatpush1.bf16.msra.mxu0 0
      %1603 = vmatprep.subr.bf16.mxu0 0
      %1604 = vmatpush1.bf16.msra.mxu0 0
      %1605 = vmatprep.subr.bf16.mxu0 0
      %1606 = vmatpush1.bf16.msra.mxu0 0
      %1607 = vmatprep.subr.bf16.mxu0 0
      %1608 = vmatpush1.bf16.msra.mxu0 0
      %1609 = vmatprep.subr.bf16.mxu0 0
      %1610 = vmatpush1.bf16.msra.mxu0 0
      %1611 = vmatprep.subr.bf16.mxu0 0
      %1612 = vmatpush1.bf16.msra.mxu0 0
      %1613 = vmatprep.subr.bf16.mxu0 0
      %1614 = vmatpush1.bf16.msra.mxu0 0
      %1615 = vmatprep.subr.bf16.mxu0 0
      %1616 = vmatpush1.bf16.msra.mxu0 0
      %1617 = vmatprep.mubr.bf16.mxu0 0
      %1618 = vmatmul.mubr.bf16.gmra.mrb[0].mxu0 %v1464
      %v1619 = vpop.f32.mrb[0].mxu0
      %v1620 = vadd.f32 0.0, %v1619
      %v1621 = vpop.f32.mrb[0].mxu0
      %v1622 = vpop.f32.mrb[0].mxu0
      %v1623 = vadd.f32 0.0, %v1622
      %v1624 = vpop.f32.mrb[0].mxu0
      %1625 = vmatprep.mubr.bf16.mxu0 0
      %1626 = vmatmul.mubr.bf16.gmra.mrb[0].mxu0 %v1465
      %v1627 = vpop.f32.mrb[0].mxu0
      %v1628 = vadd.f32 0.0, %v1627
      %v1629 = vpop.f32.mrb[0].mxu0
      %v1630 = vpop.f32.mrb[0].mxu0
      %v1631 = vadd.f32 0.0, %v1630
      %v1632 = vpop.f32.mrb[0].mxu0
      %1633 = vmatprep.mubr.bf16.mxu0 0
      %1634 = vmatmul.mubr.bf16.gmra.mrb[0].mxu0 %v1466
      %v1635 = vpop.f32.mrb[0].mxu0
      %v1636 = vadd.f32 0.0, %v1635
      %v1637 = vpop.f32.mrb[0].mxu0
      %v1638 = vpop.f32.mrb[0].mxu0
      %v1639 = vadd.f32 0.0, %v1638
      %v1640 = vpop.f32.mrb[0].mxu0
      %1641 = vmatprep.mubr.bf16.mxu0 0
      %1642 = vmatmul.mubr.bf16.gmra.mrb[0].mxu0 %v1467
      %v1643 = vpop.f32.mrb[0].mxu0
      %v1644 = vadd.f32 0.0, %v1643
      %v1645 = vpop.f32.mrb[0].mxu0
      %v1646 = vpop.f32.mrb[0].mxu0
      %v1647 = vadd.f32 0.0, %v1646
      %v1648 = vpop.f32.mrb[0].mxu0
      %1649 = vmatprep.mubr.bf16.mxu0 0
      %1650 = vmatmul.mubr.bf16.gmra.mrb[0].mxu0 %v1468
      %v1651 = vpop.f32.mrb[0].mxu0
      %v1652 = vadd.f32 0.0, %v1651
      %v1653 = vpop.f32.mrb[0].mxu0
      %v1654 = vpop.f32.mrb[0].mxu0
      %v1655 = vadd.f32 0.0, %v1654
      %v1656 = vpop.f32.mrb[0].mxu0
      %1657 = vmatprep.mubr.bf16.mxu0 0
      %1658 = vmatmul.mubr.bf16.gmra.mrb[0].mxu0 %v1469
      %v1659 = vpop.f32.mrb[0].mxu0
      %v1660 = vadd.f32 0.0, %v1659
      %v1661 = vpop.f32.mrb[0].mxu0
      %v1662 = vpop.f32.mrb[0].mxu0
      %v1663 = vadd.f32 0.0, %v1662
      %v1664 = vpop.f32.mrb[0].mxu0
      %1665 = vmatprep.mubr.bf16.mxu0 0
      %1666 = vmatmul.mubr.bf16.gmra.mrb[0].mxu0 %v1470
      %v1667 = vpop.f32.mrb[0].mxu0
      %v1668 = vadd.f32 0.0, %v1667
      %v1669 = vpop.f32.mrb[0].mxu0
      %v1670 = vpop.f32.mrb[0].mxu0
      %v1671 = vadd.f32 0.0, %v1670
      %v1672 = vpop.f32.mrb[0].mxu0
      %1673 = vmatprep.mubr.bf16.mxu0 0
      %1674 = vmatmul.mubr.bf16.gmra.mrb[0].mxu0 %v1471
      %v1675 = vpop.f32.mrb[0].mxu0
      %v1676 = vadd.f32 0.0, %v1675
      %v1677 = vpop.f32.mrb[0].mxu0
      %v1678 = vpop.f32.mrb[0].mxu0
      %v1679 = vadd.f32 0.0, %v1678
      %v1680 = vpop.f32.mrb[0].mxu0
      %1681 = vdwg.mxu0
      %v1682 = vrcp.pop %v1393
      %v1683 = vrcp.pop %v1395
      %v1684 = vrcp.pop %v1397
      %v1685 = vrcp.pop %v1399
      %v1686 = vrcp.pop %v1401
      %v1687 = vrcp.pop %v1403
      %v1688 = vrcp.pop %v1405
      %v1689 = vrcp.pop %v1407
      %v1690 = vrcp.pop %v1409
      %v1691 = vrcp.pop %v1411
      %v1692 = vrcp.pop %v1413
      %v1693 = vrcp.pop %v1415
      %v1694 = vrcp.pop %v1417
      %v1695 = vrcp.pop %v1419
      %v1696 = vrcp.pop %v1421
      %v1697 = vrcp.pop %v1423
      %v1698 = vrcp.pop %v1425
      %v1699 = vrcp.pop %v1427
      %v1700 = vrcp.pop %v1429
      %v1701 = vrcp.pop %v1431
      %v1702 = vrcp.pop %v1433
      %v1703 = vrcp.pop %v1435
      %v1704 = vrcp.pop %v1437
      %v1705 = vrcp.pop %v1439
      %v1706 = vrcp.pop %v1441
      %v1707 = vrcp.pop %v1443
      %v1708 = vrcp.pop %v1445
      %v1709 = vrcp.pop %v1447
      %v1710 = vrcp.pop %v1449
      %v1711 = vrcp.pop %v1451
      %v1712 = vrcp.pop %v1453
      %v1713 = vrcp.pop %v1455
      %v1714 = vmul.f32 %v1523, %v1682
      %v1715 = vmul.f32 %v1526, %v1683
      %v1716 = vmul.f32 %v1531, %v1684
      %v1717 = vmul.f32 %v1534, %v1685
      %v1718 = vmul.f32 %v1539, %v1686
      %v1719 = vmul.f32 %v1542, %v1687
      %v1720 = vmul.f32 %v1547, %v1688
      %v1721 = vmul.f32 %v1550, %v1689
      %v1722 = vmul.f32 %v1555, %v1690
      %v1723 = vmul.f32 %v1558, %v1691
      %v1724 = vmul.f32 %v1563, %v1692
      %v1725 = vmul.f32 %v1566, %v1693
      %v1726 = vmul.f32 %v1571, %v1694
      %v1727 = vmul.f32 %v1574, %v1695
      %v1728 = vmul.f32 %v1579, %v1696
      %v1729 = vmul.f32 %v1582, %v1697
      %v1730 = vmul.f32 %v1620, %v1698
      %v1731 = vmul.f32 %v1623, %v1699
      %v1732 = vmul.f32 %v1628, %v1700
      %v1733 = vmul.f32 %v1631, %v1701
      %v1734 = vmul.f32 %v1636, %v1702
      %v1735 = vmul.f32 %v1639, %v1703
      %v1736 = vmul.f32 %v1644, %v1704
      %v1737 = vmul.f32 %v1647, %v1705
      %v1738 = vmul.f32 %v1652, %v1706
      %v1739 = vmul.f32 %v1655, %v1707
      %v1740 = vmul.f32 %v1660, %v1708
      %v1741 = vmul.f32 %v1663, %v1709
      %v1742 = vmul.f32 %v1668, %v1710
      %v1743 = vmul.f32 %v1671, %v1711
      %v1744 = vmul.f32 %v1676, %v1712
      %v1745 = vmul.f32 %v1679, %v1713
      %1746 = vst.msk [vmem:[%s150] sm:$0xff] %vm818, %v1714
      %1747 = vst.msk [vmem:[%s150 + $0x8] sm:$0xff] %vm818, %v1715
      %1748 = vst.msk [vmem:[%s150 + $0x10] sm:$0xff] %vm818, %v1716
      %1749 = vst.msk [vmem:[%s150 + $0x18] sm:$0xff] %vm818, %v1717
      %1750 = vst.msk [vmem:[%s150 + $0x20] sm:$0xff] %vm818, %v1718
      %1751 = vst.msk [vmem:[%s150 + $0x28] sm:$0xff] %vm818, %v1719
      %1752 = vst.msk [vmem:[%s150 + $0x30] sm:$0xff] %vm818, %v1720
      %1753 = vst.msk [vmem:[%s150 + $0x38] sm:$0xff] %vm818, %v1721
      %1754 = vst.msk [vmem:[%s150 + $0x40] sm:$0xff] %vm818, %v1722
      %1755 = vst.msk [vmem:[%s150 + $0x48] sm:$0xff] %vm818, %v1723
      %1756 = vst.msk [vmem:[%s150 + $0x50] sm:$0xff] %vm818, %v1724
      %1757 = vst.msk [vmem:[%s150 + $0x58] sm:$0xff] %vm818, %v1725
      %1758 = vst.msk [vmem:[%s150 + $0x60] sm:$0xff] %vm818, %v1726
      %1759 = vst.msk [vmem:[%s150 + $0x68] sm:$0xff] %vm818, %v1727
      %1760 = vst.msk [vmem:[%s150 + $0x70] sm:$0xff] %vm818, %v1728
      %1761 = vst.msk [vmem:[%s150 + $0x78] sm:$0xff] %vm818, %v1729
      %1762 = vst.msk [vmem:[%s150 + $0x80] sm:$0xff] %vm818, %v1730
      %1763 = vst.msk [vmem:[%s150 + $0x88] sm:$0xff] %vm818, %v1731
      %1764 = vst.msk [vmem:[%s150 + $0x90] sm:$0xff] %vm818, %v1732
      %1765 = vst.msk [vmem:[%s150 + $0x98] sm:$0xff] %vm818, %v1733
      %1766 = vst.msk [vmem:[%s150 + $0xa0] sm:$0xff] %vm818, %v1734
      %1767 = vst.msk [vmem:[%s150 + $0xa8] sm:$0xff] %vm818, %v1735
      %1768 = vst.msk [vmem:[%s150 + $0xb0] sm:$0xff] %vm818, %v1736
      %1769 = vst.msk [vmem:[%s150 + $0xb8] sm:$0xff] %vm818, %v1737
      %1770 = vst.msk [vmem:[%s150 + $0xc0] sm:$0xff] %vm818, %v1738
      %1771 = vst.msk [vmem:[%s150 + $0xc8] sm:$0xff] %vm818, %v1739
      %1772 = vst.msk [vmem:[%s150 + $0xd0] sm:$0xff] %vm818, %v1740
      %1773 = vst.msk [vmem:[%s150 + $0xd8] sm:$0xff] %vm818, %v1741
      %1774 = vst.msk [vmem:[%s150 + $0xe0] sm:$0xff] %vm818, %v1742
      %1775 = vst.msk [vmem:[%s150 + $0xe8] sm:$0xff] %vm818, %v1743
      %1776 = vst.msk [vmem:[%s150 + $0xf0] sm:$0xff] %vm818, %v1744
      %1777 = vst.msk [vmem:[%s150 + $0xf8] sm:$0xff] %vm818, %v1745
      %s1778 = smul.u32 2, %s13
      %p1779 = scmp.lt.s32.totalorder %s1778, 3
      %s1780 = scalar_select %p1779, %s1778, 3
      %s1781 = smul.addr %s1780, 16
      %s1782 = smul.addr %s1781, 8
      %s1783 = scalar_lea.vmem %s2, %s1782
      // Predicated region
      $region29: #{head_forward.1} parent=27 // pred_check
        %p1784 = pneg %p78
      $region30: #{head_forward.1} parent=27 // pred_check_branch
        %1786 = sbr.rel (%p1784) target = $region32
      $region31: #{head_forward.1} parent=27 // pred_region
        %s1787 = smul.u32 2, %s13
      $region32: #{head_forward.1} parent=27 // pred_fallthru
        _
    $region28: #{head_forward.1} parent=5 // pred_fallthru
      _
    %p1788 = scmp.le.s32.totalorder 2, %s8
    // Predicated region
    $region33: #{head_forward.1} parent=5 // pred_check
      %p1789 = pneg %p1788
    $region34: #{head_forward.1} parent=5 // pred_check_branch
      %1791 = sbr.rel (%p1789) target = $region36
    $region35: #{head_forward.1} parent=5 // pred_region
      %s1792 = ssub.s32 %s8, 2
      // Predicated region
      $region37: #{head_forward.1} parent=35 // pred_check
        %p1793 = pneg %p84
      $region38: #{head_forward.1} parent=35 // pred_check_branch
        %1795 = sbr.rel (%p1793) target = $region40
      $region39: #{head_forward.1} parent=35 // pred_region
        %s1796 = smul.u32 2, %s14
        %p1797 = scmp.lt.s32.totalorder %s1796, 3
        %s1798 = scalar_select %p1797, %s1796, 3
        %s1799 = smul.addr %s1798, 16
        %s1800 = smul.addr %s1799, 8
        %s1801 = scalar_lea.vmem %s2, %s1800
      $region40: #{head_forward.1} parent=35 // pred_fallthru
        _
    $region36: #{head_forward.1} parent=5 // pred_fallthru
      _
  $region6: #{head_forward.1} parent=0 // loop_footer
    %s12 = sadd.s32 1, %s8
  $region7: #{head_forward.1} parent=0 // loop_footer_branch
    %7 = sbr.rel target = $region3
  $region8: #{head_forward.1} parent=0 // loop_exit
    _

</llo_original>
